<compile_context>
chip_gen: v5e
topology: v5e:2x2
jax: 0.10.0
libtpu: 0.0.40
codegen_flags: <defaults>
</compile_context>

<pallas_src>
import functools

import jax
import jax.numpy as jnp
from jax.experimental import pallas as pl
from jax.experimental.pallas import tpu as pltpu


# ----------------------------------------------------------------------------
# Pallas hot path: tiled matmul, fused bias + optional ReLU + optional skip.
# ----------------------------------------------------------------------------
def _round_up(x, m):
    return ((x + m - 1) // m) * m


def _max_tn():
    # v5-class MXUs are 128-wide; wider N tiles gain nothing there.
    try:
        kind = jax.devices()[0].device_kind.lower()
        if "v4" in kind or "v5" in kind:
            return 128
    except Exception:
        pass
    return 256


_TN_MAX = _max_tn()


def _m_tiles(M):
    if M <= 1024:
        mp = _round_up(M, 8)
        tm = mp
        # split so small-layer grids still expose >=2 parallel tiles (v7x 2 TCs).
        if tm >= 512 and tm % 16 == 0:
            tm //= 2
        return mp, tm
    mp = _round_up(M, 128)
    for t in (512, 256, 128):
        if mp % t == 0:
            return mp, t
    return mp, 128


def _k_tiles(K):
    if K <= 2048:
        kp = _round_up(K, 128)
        return kp, kp
    for t in (512, 256):
        kp = _round_up(K, t)
        if kp - K <= max(128, K // 16):
            return kp, t
    return _round_up(K, 128), 128


def _n_tiles(N):
    if N < 16:
        return 128, 128
    if N < 128:
        return N, N                      # lane-masked stores, but no zero padding/slice
    np_ = _round_up(N, 128)
    tn = 256 if (np_ % 256 == 0 and _TN_MAX >= 256) else 128
    return np_, tn


def _mm_kernel(*refs, relu, has_skip, skip_first):
    if has_skip:
        a_ref, b_ref, bias_ref, skip_ref, o_ref, acc_ref = refs
    else:
        a_ref, b_ref, bias_ref, o_ref, acc_ref = refs
        skip_ref = None

    @pl.when(pl.program_id(2) == 0)
    def _():
        acc_ref[...] = jnp.zeros_like(acc_ref)

    acc_ref[...] += jnp.dot(a_ref[...], b_ref[...],
                            preferred_element_type=jnp.float32)

    @pl.when(pl.program_id(2) == pl.num_programs(2) - 1)
    def _():
        r = acc_ref[...] + bias_ref[...]
        if has_skip and skip_first:
            r = r + skip_ref[...].astype(jnp.float32)
        if relu:
            r = jnp.maximum(r, 0.0)
        if has_skip and not skip_first:
            r = r + skip_ref[...].astype(jnp.float32)
        o_ref[...] = r.astype(o_ref.dtype)


def matmul_bias_act(a, b, bias, skip=None, *, relu, skip_first=True):
    """out = epilogue(a @ b); a:(M,K) b:(K,N) bias:(N,) skip:(M,N) or None.
    Only called from inside jitted wrappers (shapes are static)."""
    M, K = a.shape
    Kb, N = b.shape
    assert K == Kb
    Mp, TM = _m_tiles(M)
    Kp, TK = _k_tiles(K)
    Np, TN = _n_tiles(N)

    a = a.astype(jnp.bfloat16)
    b = b.astype(jnp.bfloat16)
    if Mp != M or Kp != K:
        a = jnp.pad(a, ((0, Mp - M), (0, Kp - K)))
    if Kp != K or Np != N:
        b = jnp.pad(b, ((0, Kp - K), (0, Np - N)))
    bias_p = bias.astype(jnp.float32)
    if Np != N:
        bias_p = jnp.pad(bias_p, (0, Np - N))
    bias_p = bias_p.reshape(1, Np)

    args = [a, b, bias_p]
    in_specs = [pl.BlockSpec((TM, TK), lambda i, j, k: (i, k)),
                pl.BlockSpec((TK, TN), lambda i, j, k: (k, j)),
                pl.BlockSpec((1, TN), lambda i, j, k: (0, j))]
    has_skip = skip is not None
    if has_skip:
        s = skip.astype(jnp.bfloat16)
        if Mp != M or Np != N:
            s = jnp.pad(s, ((0, Mp - M), (0, Np - N)))
        args.append(s)
        in_specs.append(pl.BlockSpec((TM, TN), lambda i, j, k: (i, j)))

    out = pl.pallas_call(
        functools.partial(_mm_kernel, relu=relu, has_skip=has_skip,
                          skip_first=skip_first),
        out_shape=jax.ShapeDtypeStruct((Mp, Np), jnp.bfloat16),
        grid_spec=pltpu.PrefetchScalarGridSpec(
            num_scalar_prefetch=0,
            grid=(Mp // TM, Np // TN, Kp // TK),
            in_specs=in_specs,
            out_specs=pl.BlockSpec((TM, TN), lambda i, j, k: (i, j)),
            scratch_shapes=[pltpu.VMEM((TM, TN), jnp.float32)]),
        compiler_params=pltpu.CompilerParams(
            dimension_semantics=("parallel", "parallel", "arbitrary")),
    )(*args)
    if Mp != M or Np != N:
        out = out[:M, :N]
    return out


# ----------------------------------------------------------------------------
# Conv / pooling / upsample wrappers (im2col glue in JAX, matmul in Pallas)
# ----------------------------------------------------------------------------
def _im2col(x, KH, KW, stride, dilation, k_pad):
    """x already spatially padded; returns (patches (M, KH*KW*Cin + k_pad), Ho, Wo).
    Zero K-padding columns are appended inside the concat so no extra HBM copy."""
    N, Hp, Wp, Cin = x.shape
    Ho = (Hp - dilation * (KH - 1) - 1) // stride + 1
    Wo = (Wp - dilation * (KW - 1) - 1) // stride + 1
    taps = []
    for kh in range(KH):
        for kw in range(KW):
            taps.append(jax.lax.slice(
                x,
                (0, kh * dilation, kw * dilation, 0),
                (N, kh * dilation + (Ho - 1) * stride + 1,
                 kw * dilation + (Wo - 1) * stride + 1, Cin),
                (1, stride, stride, 1)))
    if k_pad:
        taps.append(jnp.zeros((N, Ho, Wo, k_pad), x.dtype))
    patches = jnp.concatenate(taps, axis=-1)
    return patches.reshape(N * Ho * Wo, KH * KW * Cin + k_pad), Ho, Wo


@functools.partial(jax.jit, static_argnames=("stride", "padding", "dilation",
                                             "relu", "skip_first"))
def _conv2d_impl(x, w, b, skip, stride, padding, dilation, relu, skip_first):
    x = x.astype(jnp.bfloat16)
    KH, KW, Cin, Cout = w.shape
    if padding:
        x = jnp.pad(x, ((0, 0), (padding, padding), (padding, padding), (0, 0)))
    K = KH * KW * Cin
    Kp, _ = _k_tiles(K)
    patches, Ho, Wo = _im2col(x, KH, KW, stride, dilation, Kp - K)
    wm = w.reshape(K, Cout).astype(jnp.bfloat16)
    if Kp != K:
        wm = jnp.pad(wm, ((0, Kp - K), (0, 0)))
    Nb = x.shape[0]
    skip2 = None
    if skip is not None:
        skip2 = skip.reshape(Nb * Ho * Wo, Cout).astype(jnp.bfloat16)
    out = matmul_bias_act(patches, wm, b, skip2, relu=relu, skip_first=skip_first)
    return out.reshape(Nb, Ho, Wo, Cout)


def conv2d(x, w, b, stride=1, padding=0, dilation=1, relu=False,
           skip=None, skip_first=True):
    """x: (N,H,W,Cin);  w: (KH,KW,Cin,Cout);  b: (Cout,);  skip: (N,Ho,Wo,Cout)|None."""
    return _conv2d_impl(x, w, b, skip, stride=stride, padding=padding,
                        dilation=dilation, relu=relu, skip_first=skip_first)


def conv_transpose2d(x, w, b, stride, padding, output_padding=0, relu=False):
    """ConvTranspose2d.  `w` is stored in the equivalent-conv HWIO (flipped) layout.
    Uses a sub-pixel (stride^2 phase) decomposition so no multiply-by-zero taps."""
    KH, KW, Cin, Cout = w.shape
    s = stride
    Nb, H, W, _ = x.shape
    Ho = (H - 1) * s - 2 * padding + KH + output_padding
    Wo = (W - 1) * s - 2 * padding + KW + output_padding
    lo = KH - 1 - padding

    def _phase_taps(r, K):
        ks = [k for k in range(K) if (k - (lo - r)) % s == 0]
        offs = [(r + k - lo) // s for k in ks]
        return ks, offs

    use_subpixel = (s > 1 and Ho % s == 0 and Wo % s == 0 and KH == KW
                    and all(_phase_taps(r, KH)[0] for r in range(s)))
    if not use_subpixel:
        # fallback: zero-dilate the input, then a stride-1 conv.
        hi = KH - 1 - padding + output_padding
        xd = jax.lax.pad(x, jnp.array(0.0, x.dtype),
                         ((0, 0, 0), (lo, hi, s - 1), (lo, hi, s - 1), (0, 0, 0)))
        return conv2d(xd, w, b, relu=relu)

    Qh, Qw = Ho // s, Wo // s
    rows = []
    for rh in range(s):
        ksh, offh = _phase_taps(rh, KH)
        cols = []
        for rw in range(s):
            ksw, offw = _phase_taps(rw, KW)
            wsub = w[jnp.array(ksh)][:, jnp.array(ksw)]      # (len_h, len_w, Cin, Cout)
            plh = max(0, -offh[0])
            phh = max(0, Qh - 1 + offh[-1] - (H - 1))
            plw = max(0, -offw[0])
            phw = max(0, Qw - 1 + offw[-1] - (W - 1))
            xp = x
            if plh or phh or plw or phw:
                xp = jnp.pad(xp, ((0, 0), (plh, phh), (plw, phw), (0, 0)))
            sh, sw = offh[0] + plh, offw[0] + plw
            xp = xp[:, sh:sh + Qh - 1 + len(offh), sw:sw + Qw - 1 + len(offw), :]
            cols.append(conv2d(xp, wsub, b, relu=relu))
        rows.append(jnp.stack(cols, axis=3))                 # (Nb, Qh, Qw, s, Cout)
    y = jnp.stack(rows, axis=2)                              # (Nb, Qh, s, Qw, s, Cout)
    return y.reshape(Nb, Ho, Wo, Cout)


def maxpool2d(x, k, s, p=0):
    N, H, W, C = x.shape
    if p:
        x = jnp.pad(x, ((0, 0), (p, p), (p, p), (0, 0)), constant_values=-jnp.inf)
    Hp, Wp = x.shape[1], x.shape[2]
    Ho = (Hp - k) // s + 1
    Wo = (Wp - k) // s + 1
    out = None
    for kh in range(k):
        for kw in range(k):
            sl = jax.lax.slice(x, (0, kh, kw, 0),
                               (N, kh + (Ho - 1) * s + 1,
                                kw + (Wo - 1) * s + 1, C),
                               (1, s, s, 1))
            out = sl if out is None else jnp.maximum(out, sl)
    return out


def upsample_bilinear_align_corners(x, out_h, out_w):
    N, H, W, C = x.shape

    def coords(o, i):
        if o > 1 and i > 1:
            src = jnp.arange(o, dtype=jnp.float32) * ((i - 1) / (o - 1))
        else:
            src = jnp.zeros((o,), jnp.float32)
        i0 = jnp.clip(jnp.floor(src).astype(jnp.int32), 0, i - 1)
        i1 = jnp.clip(i0 + 1, 0, i - 1)
        return i0, i1, src - i0.astype(jnp.float32)

    y0, y1, fy = coords(out_h, H)
    x0, x1, fx = coords(out_w, W)
    top = jnp.take(x, y0, axis=1)
    bot = jnp.take(x, y1, axis=1)
    rows = top * (1.0 - fy)[None, :, None, None] + bot * fy[None, :, None, None]
    left = jnp.take(rows, x0, axis=2)
    right = jnp.take(rows, x1, axis=2)
    out = left * (1.0 - fx)[None, None, :, None] + right * fx[None, None, :, None]
    return out.astype(x.dtype)


# ----------------------------------------------------------------------------
# Deterministic synthetic parameters
# ----------------------------------------------------------------------------
class ParamGen:
    def __init__(self, seed=0):
        self.key = jax.random.PRNGKey(seed)

    def next(self):
        self.key, sub = jax.random.split(self.key)
        return sub


def conv_params(pg, cin, cout, k):
    fan_in = cin * k * k
    w = jax.random.normal(pg.next(), (k, k, cin, cout), jnp.float32) * (2.0 / fan_in) ** 0.5
    return [w, jnp.zeros((cout,), jnp.float32)]


def convT_params(pg, cin, cout, k):
    fan_in = cin * k * k
    wt = jax.random.normal(pg.next(), (cin, cout, k, k), jnp.float32) * (2.0 / fan_in) ** 0.5
    # torch (Cin,Cout,KH,KW) -> equivalent-conv HWIO, spatially flipped.
    w = jnp.transpose(wt[:, :, ::-1, ::-1], (2, 3, 0, 1))
    return [w, jnp.zeros((cout,), jnp.float32)]


def fold_bn(conv, cout, eps=1e-5):
    # BatchNorm2d eval semantics folded into the preceding conv.
    # Synthetic init: gamma=1, beta=0, running_mean=0, running_var=1.
    w, b = conv
    gamma = jnp.ones((cout,), jnp.float32)
    beta = jnp.zeros((cout,), jnp.float32)
    mean = jnp.zeros((cout,), jnp.float32)
    var = jnp.ones((cout,), jnp.float32)
    s = gamma / jnp.sqrt(var + eps)
    return [w * s, (b - mean) * s + beta]


# ----- module blocks ---------------------------------------------------------
def resblock_params(pg, ch, k=5):
    return {'c1': conv_params(pg, ch, ch, k), 'c2': conv_params(pg, ch, ch, k)}


def run_resblock(p, x, pad=2):
    # Reference uses inplace ReLU, so the residual branch sees relu(conv1(x)).
    a = conv2d(x, *p['c1'], padding=pad, relu=True)
    # relu(conv2(a) + a) fused into the Pallas epilogue.
    return conv2d(a, *p['c2'], padding=pad, relu=True, skip=a, skip_first=True)


def basic_block_params(pg, cin, cout, stride):
    p = {'stride': stride,
         'cb1': fold_bn(conv_params(pg, cin, cout, 3), cout),
         'cb2': fold_bn(conv_params(pg, cout, cout, 3), cout)}
    if stride != 1 or cin != cout:
        p['ds'] = fold_bn(conv_params(pg, cin, cout, 1), cout)
    return p


def run_basic_block(p, x):
    idt = conv2d(x, *p['ds'], stride=p['stride'], relu=False) if 'ds' in p else x
    out = conv2d(x, *p['cb1'], stride=p['stride'], padding=1, relu=True)
    # relu(conv2(out) + identity) fused into the Pallas epilogue.
    return conv2d(out, *p['cb2'], padding=1, relu=True, skip=idt, skip_first=True)


def run_layer(layer, x):
    for blk in layer:
        x = run_basic_block(blk, x)
    return x


def dac_params(pg, ch=512):
    return {'d1': conv_params(pg, ch, ch, 3),
            'd2': conv_params(pg, ch, ch, 3),
            'd3': conv_params(pg, ch, ch, 3),
            'c1': conv_params(pg, ch, ch, 1)}


def run_dac(p, x):
    # Matches the PyTorch DACblock dataflow:
    #   o1 = relu(d1(x)); o2 = relu(c1(d2(x)));
    #   o3 = relu(c1(d2(d1(x)))); o4 = relu(c1(d3(d2(d1(x)))))
    a = conv2d(x, *p['d1'], padding=1, dilation=1, relu=False)
    b = conv2d(x, *p['d2'], padding=3, dilation=3, relu=False)
    c = conv2d(a, *p['d2'], padding=3, dilation=3, relu=False)
    d = conv2d(c, *p['d3'], padding=5, dilation=5, relu=False)
    o1 = jnp.maximum(a, 0.0).astype(a.dtype)
    o2 = conv2d(b, *p['c1'], relu=True)
    o3 = conv2d(c, *p['c1'], relu=True)
    o4 = conv2d(d, *p['c1'], relu=True)
    return x + o1 + o2 + o3 + o4


def spp_params(pg, ch=512):
    return {'conv': conv_params(pg, ch, 1, 1)}


def run_spp(p, x):
    N, H, W, C = x.shape
    outs = []
    for k in (2, 3, 5, 6):
        y = conv2d(maxpool2d(x, k, k), *p['conv'], relu=False)
        outs.append(upsample_bilinear_align_corners(y, H, W))
    outs.append(x)
    return jnp.concatenate(outs, axis=-1)


def decoder_params(pg, cin, nf):
    mid = cin // 4
    return {'cb1': fold_bn(conv_params(pg, cin, mid, 1), mid),
            'cb2': fold_bn(convT_params(pg, mid, mid, 3), mid),
            'cb3': fold_bn(conv_params(pg, mid, nf, 1), nf)}


def run_decoder(p, x, skip=None):
    x = conv2d(x, *p['cb1'], relu=True)
    x = conv_transpose2d(x, *p['cb2'], stride=2, padding=1, output_padding=1, relu=True)
    # relu(conv3(x)) + skip   (skip added after the ReLU, matching `decoder(x) + e`)
    x = conv2d(x, *p['cb3'], relu=True, skip=skip, skip_first=False)
    return x


def build_params(seed=0):
    pg = ParamGen(seed)
    P = {}
    # ---- SR generator branch (bias=False since norm_layer == BatchNorm2d) ----
    P['G_conv1'] = conv_params(pg, 6, 32, 5)
    for n in ('G_conv1_1', 'G_conv1_2', 'G_conv1_3'):
        P[n] = resblock_params(pg, 32)
    P['G_conv2_0'] = conv_params(pg, 32, 64, 5)
    P['G_conv2'] = conv_params(pg, 128, 64, 5)
    for n in ('G_conv2_1', 'G_conv2_2', 'G_conv2_3'):
        P[n] = resblock_params(pg, 64)
    P['G_conv3_0'] = conv_params(pg, 64, 64, 5)
    P['G_conv3'] = conv_params(pg, 128, 64, 5)
    for n in ('G_conv3_1', 'G_conv3_2', 'G_conv3_3'):
        P[n] = resblock_params(pg, 64)
    P['G_conv4_0'] = conv_params(pg, 64, 128, 5)
    P['G_conv4'] = conv_params(pg, 256, 128, 5)
    for n in ('G_conv4_1', 'G_conv4_2', 'G_conv4_3',
              'G_deconv4_3', 'G_deconv4_2', 'G_deconv4_1'):
        P[n] = resblock_params(pg, 128)
    P['G_deconv4_0'] = convT_params(pg, 128, 64, 4)
    for n in ('G_deconv3_3', 'G_deconv3_2', 'G_deconv3_1'):
        P[n] = resblock_params(pg, 64)
    P['G_deconv3_0'] = convT_params(pg, 64, 64, 4)
    for n in ('G_deconv2_3', 'G_deconv2_2', 'G_deconv2_1'):
        P[n] = resblock_params(pg, 64)
    P['G_deconv2_0'] = convT_params(pg, 64, 32, 4)
    for n in ('G_deconv1_3', 'G_deconv1_2', 'G_deconv1_1'):
        P[n] = resblock_params(pg, 32)
    P['G_deconv1_0'] = conv_params(pg, 32, 3, 5)

    # ---- ResNet-34 encoder (synthetic weights, BN folded) ----
    P['firstconv'] = fold_bn(conv_params(pg, 3, 64, 7), 64)

    def make_layer(cin, cout, blocks, stride):
        layer = [basic_block_params(pg, cin, cout, stride)]
        for _ in range(blocks - 1):
            layer.append(basic_block_params(pg, cout, cout, 1))
        return layer

    P['layer1'] = make_layer(64, 64, 3, 1)
    P['layer2'] = make_layer(64, 128, 4, 2)
    P['layer3'] = make_layer(128, 256, 6, 2)
    P['layer4'] = make_layer(256, 512, 3, 2)

    P['dblock'] = dac_params(pg, 512)
    P['spp'] = spp_params(pg, 512)
    P['decoder4'] = decoder_params(pg, 516, 256)
    P['decoder3'] = decoder_params(pg, 256, 128)
    P['decoder2'] = decoder_params(pg, 128, 64)
    P['decoder1'] = decoder_params(pg, 64, 64)
    P['finaldeconv1'] = convT_params(pg, 64, 32, 4)
    P['finalconv2'] = conv_params(pg, 32, 32, 3)
    P['finalconv3'] = conv_params(pg, 32, 1, 3)
    return P


# ----------------------------------------------------------------------------
# Forward pass
# ----------------------------------------------------------------------------
def nchw_to_nhwc(x):
    return jnp.transpose(x, (0, 2, 3, 1))


def nhwc_to_nchw(x):
    return jnp.transpose(x, (0, 3, 1, 2))


def eyes_image_sr_forward(P, input_512, input_norm):
    xn = nchw_to_nhwc(input_norm).astype(jnp.bfloat16)

    # ---- CE-Net style segmentation branch ----
    x = conv2d(xn, *P['firstconv'], stride=2, padding=3, relu=True)
    x = maxpool2d(x, 3, 2, p=1)
    e1 = run_layer(P['layer1'], x)
    e2 = run_layer(P['layer2'], e1)
    e3 = run_layer(P['layer3'], e2)
    e4 = run_layer(P['layer4'], e3)
    e4 = run_dac(P['dblock'], e4)
    e4 = run_spp(P['spp'], e4)
    d4 = run_decoder(P['decoder4'], e4, skip=e3)
    d3 = run_decoder(P['decoder3'], d4, skip=e2)
    d2 = run_decoder(P['decoder2'], d3, skip=e1)
    d1 = run_decoder(P['decoder1'], d2)
    out = conv_transpose2d(d1, *P['finaldeconv1'], stride=2, padding=1, relu=True)
    out = conv2d(out, *P['finalconv2'], padding=1, relu=True)
    out = conv2d(out, *P['finalconv3'], padding=1, relu=False)
    out = jax.nn.sigmoid(out)

    # ---- SR generator branch ----
    x512 = nchw_to_nhwc(input_512).astype(jnp.bfloat16)
    inp = jnp.concatenate([x512, x512], axis=-1)
    x = conv2d(inp, *P['G_conv1'], padding=2, relu=True)
    x = run_resblock(P['G_conv1_1'], x)
    x = run_resblock(P['G_conv1_2'], x)
    x_512 = run_resblock(P['G_conv1_3'], x)

    x = conv2d(x_512, *P['G_conv2_0'], stride=2, padding=2, relu=True)
    con_2 = jnp.concatenate([x, d1], axis=-1)
    x = conv2d(con_2, *P['G_conv2'], padding=2, relu=True)
    x = run_resblock(P['G_conv2_1'], x)
    x = run_resblock(P['G_conv2_2'], x)
    x_256 = run_resblock(P['G_conv2_3'], x)

    x = conv2d(x_256, *P['G_conv3_0'], stride=2, padding=2, relu=True)
    con_4 = jnp.concatenate([x, d2], axis=-1)
    x = conv2d(con_4, *P['G_conv3'], padding=2, relu=True)
    x = run_resblock(P['G_conv3_1'], x)
    x = run_resblock(P['G_conv3_2'], x)
    x_128 = run_resblock(P['G_conv3_3'], x)

    x = conv2d(x_128, *P['G_conv4_0'], stride=2, padding=2, relu=True)
    con_8 = jnp.concatenate([x, d3], axis=-1)
    x = conv2d(con_8, *P['G_conv4'], padding=2, relu=True)
    x = run_resblock(P['G_conv4_1'], x)
    x = run_resblock(P['G_conv4_2'], x)
    x = run_resblock(P['G_conv4_3'], x)
    x = run_resblock(P['G_deconv4_3'], x)
    x = run_resblock(P['G_deconv4_2'], x)
    x = run_resblock(P['G_deconv4_1'], x)
    x = conv_transpose2d(x, *P['G_deconv4_0'], stride=2, padding=1, relu=False)
    x = x + x_128
    x = run_resblock(P['G_deconv3_3'], x)
    x = run_resblock(P['G_deconv3_2'], x)
    x = run_resblock(P['G_deconv3_1'], x)
    x = conv_transpose2d(x, *P['G_deconv3_0'], stride=2, padding=1, relu=False)
    x = x + x_256
    x = run_resblock(P['G_deconv2_3'], x)
    x = run_resblock(P['G_deconv2_2'], x)
    x = run_resblock(P['G_deconv2_1'], x)
    x = conv_transpose2d(x, *P['G_deconv2_0'], stride=2, padding=1, relu=False)
    x = x + x_512
    x = run_resblock(P['G_deconv1_3'], x)
    x = run_resblock(P['G_deconv1_2'], x)
    x = run_resblock(P['G_deconv1_1'], x)
    x = conv2d(x, *P['G_deconv1_0'], padding=2, relu=False)
    output_512 = jax.nn.sigmoid(x)

    return (nhwc_to_nchw(output_512).astype(jnp.float32),
            nhwc_to_nchw(out).astype(jnp.float32))


if __name__ == "__main__":
    # Smallest spatial size compatible with the SPP block (needs H/32 >= 6).
    S = 192
    key = jax.random.PRNGKey(0)
    k1, k2 = jax.random.split(key)
    input_512 = jax.random.uniform(k1, (1, 3, S, S), jnp.float32)
    input_norm = jax.random.uniform(k2, (1, 3, S, S), jnp.float32)

    params = build_params(seed=0)
    output_512, out = eyes_image_sr_forward(params, input_512, input_norm)
    jax.block_until_ready((output_512, out))

    assert output_512.shape == (1, 3, S, S), output_512.shape
    assert out.shape == (1, 1, S, S), out.shape
    assert bool(jnp.all(jnp.isfinite(output_512))) and bool(jnp.all(jnp.isfinite(out)))
    print("KERNEL_OK")
</pallas_src>

<mosaic_0001>
module attributes {stable_mosaic.version = 11 : i64} {
  func.func @_mm_kernel(%arg0: i32, %arg1: i32, %arg2: i32, %arg3: memref<512x256xbf16, #tpu.memory_space<vmem>>, %arg4: memref<256x64xbf16, #tpu.memory_space<vmem>>, %arg5: memref<1x64xf32, #tpu.memory_space<vmem>>, %arg6: memref<512x64xbf16, #tpu.memory_space<vmem>>, %arg7: memref<512x64xf32, #tpu.memory_space<vmem>>) attributes {dimension_semantics = [#tpu.dimension_semantics<parallel>, #tpu.dimension_semantics<parallel>, #tpu.dimension_semantics<arbitrary>], iteration_bounds = array<i64: 18, 1, 1>, scalar_prefetch = 0 : i64, scratch_operands = 1 : i64, tpu.core_type = #tpu.core_type<tc>, window_params = [{transform_indices = @transform_0, window_bounds = array<i64: 512, 256>}, {transform_indices = @transform_1, window_bounds = array<i64: 256, 64>}, {transform_indices = @transform_2, window_bounds = array<i64: 1, 64>}, {transform_indices = @transform_3, window_bounds = array<i64: 512, 64>}]} {
    %c0_i32 = arith.constant 0 : i32
    %0 = arith.cmpi eq, %arg2, %c0_i32 : i32
    %1 = arith.extui %0 : i1 to i32
    %c0_i32_0 = arith.constant 0 : i32
    %2 = arith.cmpi ne, %1, %c0_i32_0 : i32
    scf.if %2 {
      %cst_10 = arith.constant 0.000000e+00 : f32
      %12 = vector.broadcast %cst_10 : f32 to vector<512x64xf32>
      %c0_11 = arith.constant 0 : index
      %c0_12 = arith.constant 0 : index
      %13 = vector.load %arg7[%c0_11, %c0_12] : memref<512x64xf32, #tpu.memory_space<vmem>>, vector<512x64xf32>
      tpu.vector_store %arg7[%c0_11, %c0_12], %12 {strides = array<i32>} : memref<512x64xf32, #tpu.memory_space<vmem>>, vector<512x64xf32>,
    } else {
    }
    %c0 = arith.constant 0 : index
    %c0_1 = arith.constant 0 : index
    %3 = vector.load %arg7[%c0, %c0_1] : memref<512x64xf32, #tpu.memory_space<vmem>>, vector<512x64xf32>
    %c0_2 = arith.constant 0 : index
    %c0_3 = arith.constant 0 : index
    %4 = vector.load %arg3[%c0_2, %c0_3] : memref<512x256xbf16, #tpu.memory_space<vmem>>, vector<512x256xbf16>
    %c0_4 = arith.constant 0 : index
    %c0_5 = arith.constant 0 : index
    %5 = vector.load %arg4[%c0_4, %c0_5] : memref<256x64xbf16, #tpu.memory_space<vmem>>, vector<256x64xbf16>
    %cst = arith.constant dense<0.000000e+00> : vector<512x64xf32>
    %6 = tpu.matmul %4, %5, %cst {dimension_numbers = #tpu.dot_dimension_numbers<[1], [0], [0], [1], [0, 0, 1, 1], [], []>} : vector<512x256xbf16>, vector<256x64xbf16>, vector<512x64xf32> -> vector<512x64xf32>
    %7 = arith.addf %3, %6 : vector<512x64xf32>
    %c0_6 = arith.constant 0 : index
    %c0_7 = arith.constant 0 : index
    %8 = vector.load %arg7[%c0_6, %c0_7] : memref<512x64xf32, #tpu.memory_space<vmem>>, vector<512x64xf32>
    tpu.vector_store %arg7[%c0_6, %c0_7], %7 {strides = array<i32>} : memref<512x64xf32, #tpu.memory_space<vmem>>, vector<512x64xf32>,
    %c0_i32_8 = arith.constant 0 : i32
    %9 = arith.cmpi eq, %arg2, %c0_i32_8 : i32
    %10 = arith.extui %9 : i1 to i32
    %c0_i32_9 = arith.constant 0 : i32
    %11 = arith.cmpi ne, %10, %c0_i32_9 : i32
    scf.if %11 {
      %c0_10 = arith.constant 0 : index
      %c0_11 = arith.constant 0 : index
      %12 = vector.load %arg7[%c0_10, %c0_11] : memref<512x64xf32, #tpu.memory_space<vmem>>, vector<512x64xf32>
      %c0_12 = arith.constant 0 : index
      %c0_13 = arith.constant 0 : index
      %13 = vector.load %arg5[%c0_12, %c0_13] : memref<1x64xf32, #tpu.memory_space<vmem>>, vector<1x64xf32>
      %14 = vector.broadcast %13 : vector<1x64xf32> to vector<512x64xf32>
      %15 = arith.addf %12, %14 : vector<512x64xf32>
      %cst_14 = arith.constant 0.000000e+00 : f32
      %16 = vector.broadcast %cst_14 : f32 to vector<512x64xf32>
      %17 = arith.maximumf %15, %16 : vector<512x64xf32>
      %18 = arith.truncf %17 : vector<512x64xf32> to vector<512x64xbf16>
      %c0_15 = arith.constant 0 : index
      %c0_16 = arith.constant 0 : index
      %19 = vector.load %arg6[%c0_15, %c0_16] : memref<512x64xbf16, #tpu.memory_space<vmem>>, vector<512x64xbf16>
      tpu.vector_store %arg6[%c0_15, %c0_16], %18 {strides = array<i32>} : memref<512x64xbf16, #tpu.memory_space<vmem>>, vector<512x64xbf16>,
    } else {
    }
    return
  }
  func.func @transform_0(%arg0: i32, %arg1: i32, %arg2: i32) -> (i32, i32) {
    %c0_i32 = arith.constant 0 : i32
    return %arg0, %arg2 : i32, i32
  }
  func.func @transform_1(%arg0: i32, %arg1: i32, %arg2: i32) -> (i32, i32) {
    %c0_i32 = arith.constant 0 : i32
    return %arg2, %arg1 : i32, i32
  }
  func.func @transform_2(%arg0: i32, %arg1: i32, %arg2: i32) -> (i32, i32) {
    %c0_i32 = arith.constant 0 : i32
    %c0_i32_0 = arith.constant 0 : i32
    return %c0_i32, %arg1 : i32, i32
  }
  func.func @transform_3(%arg0: i32, %arg1: i32, %arg2: i32) -> (i32, i32) {
    %c0_i32 = arith.constant 0 : i32
    return %arg0, %arg1 : i32, i32
  }
}

</mosaic_0001>

<llo_original>
// kernel: _conv2d_impl.1
$region0: #{_conv2d_impl.1}
  #allocation0 [shape = 'u32[]', space=smem, size = 0x4, offset = 0x4, fixed_abs, tag = 'smem constant byte address 0x4 - core index']
  #allocation1 [shape = 'u32[72,128]{1,0:T(1,128)}', space=vmem, size = 0x9000, scoped, tag = 'internal scratch']
  #allocation2 [shape = 'f32[512,64]{1,0:T(8,128)}', space=vmem, size = 0x40000, scoped, tag = 'scratch operand']
  %s0 = inlined_call_operand.hbm [shape: bf16[9216,256], index: 0, kind: input, shape index: {}]
  %s1 = inlined_call_operand.vmem [shape: bf16[256,64], index: 1, kind: input, shape index: {}]
  %s2 = inlined_call_operand.vmem [shape: f32[1,64], index: 2, kind: input, shape index: {}]
  %s3 = inlined_call_operand.vmem [shape: bf16[9216,64], index: 3, kind: output, shape index: {}]
  %s4 = sld [smem:[#allocation0]]
  $region57: #{_conv2d_impl.1} parent=0
    _
  %s6 = ssub.s32 1, %s4
  %s7 = scalar_select 0, %s6, %s4
  $region1: #{_conv2d_impl.1} parent=0
    #allocation3 [shape = 'u8[524288]{0}', space=vmem, size = 0x80000, scoped, tag = 'input window, operand 0']
    #allocation4 [shape = 's32[2]{0}', space=sflag, size = 0x8, scoped, tag = 'scoped memory for _conv2d_impl.1']
    %8 = vsyncpa [#allocation4], 0
    %s9 = scalar_lea.sflag [#allocation4], 1
    %10 = vsyncpa %s9, 0
    loop: start=0, step=1, limit=20
    $region2: #{_conv2d_impl.1} parent=1 // loop_pre_header
      _
    $region3: #{_conv2d_impl.1} parent=1 // loop_header
      %s12 = sphi 0, %s16
      %p13 = scmp.ge.s32.totalorder %s12, 20
      %s19 = sphi 0, %s38
      %s20 = sphi 0, %s34
      %s21 = sphi 0, %s30
      %s22 = sphi 0, %s19
      %s23 = sphi 0, %s20
      %s24 = sphi 0, %s21
      %s25 = sphi 0, %s22
      %s26 = sphi 0, %s23
      %s27 = sphi 0, %s24
      %s43 = sphi 0, %s45
      %s46 = sphi 0, %s43
      %s47 = sphi 0, %s46
      %s63 = sphi 0, %s47
      %s71 = sphi 0, %s73
      %s74 = sphi 0, %s71
      %s75 = sphi 0, %s74
      %s91 = sphi 0, %s75
      %s97 = sphi 0, %s99
      %s100 = sphi 0, %s97
      %s101 = sphi 0, %s100
      %s117 = sphi 0, %s101
      %s125 = sphi 0, %s127
      %s128 = sphi 0, %s125
      %s129 = sphi 0, %s128
      %s145 = sphi 0, %s129
    $region4: #{_conv2d_impl.1} parent=1 // loop_header_branch
      %15 = sbr.rel (%p13) target = $region8
    $region5: #{_conv2d_impl.1} parent=1 // loop_body
      %s17 = ssub.s32 %s12, 1
      %s18 = ssub.s32 %s12, 2
      %s28 = sadd.s32 1, %s21
      %p29 = scmp.ge.s32.totalorder %s28, 1
      %s30 = scalar_select %p29, 0, %s28
      %s31 = sadd.s32 1, %s20
      %s32 = scalar_select %p29, %s31, %s20
      %p33 = scmp.ge.s32.totalorder %s32, 1
      %s34 = scalar_select %p33, 0, %s32
      %s35 = sadd.s32 1, %s19
      %s36 = scalar_select %p33, %s35, %s19
      %p37 = scmp.ge.s32.totalorder %s36, 18
      %s38 = scalar_select %p37, 0, %s36
      %s39 = ssub.s32 %s19, %s38
      %s40 = ssub.s32 %s21, %s30
      %s41 = sor.u32 %s39, %s40
      %p42 = scmp.eq.s32.totalorder %s41, 0
      %s44 = sadd.s32 %s43, 1
      %s45 = scalar_select %p42, %s43, %s44
      %p48 = pneg %p42
      %p49 = scmp.eq.s32.totalorder %s12, 17
      %p50 = por %p48, %p49
      %p51 = scmp.ne.s32.totalorder %s43, %s46
      %p52 = scmp.eq.s32.totalorder %s12, 0
      %p53 = por %p51, %p52
      %p54 = scmp.ne.s32.totalorder %s43, %s46
      %p55 = scmp.eq.s32.totalorder %s17, 17
      %p56 = por %p54, %p55
      %p57 = scmp.ne.s32.totalorder %s46, %s47
      %p58 = scmp.eq.s32.totalorder %s17, 0
      %p59 = por %p57, %p58
      %p60 = scmp.ne.s32.totalorder %s46, %s47
      %p61 = scmp.eq.s32.totalorder %s18, 17
      %p62 = por %p60, %p61
      %p64 = scmp.ne.s32.totalorder %s47, %s63
      %p65 = scmp.eq.s32.totalorder %s18, 0
      %p66 = por %p64, %p65
      %s67 = ssub.s32 %s21, %s30
      %s68 = ssub.s32 %s20, %s34
      %s69 = sor.u32 %s67, %s68
      %p70 = scmp.eq.s32.totalorder %s69, 0
      %s72 = sadd.s32 %s71, 1
      %s73 = scalar_select %p70, %s71, %s72
      %p76 = pneg %p70
      %p77 = scmp.eq.s32.totalorder %s12, 17
      %p78 = por %p76, %p77
      %p79 = scmp.ne.s32.totalorder %s71, %s74
      %p80 = scmp.eq.s32.totalorder %s12, 0
      %p81 = por %p79, %p80
      %p82 = scmp.ne.s32.totalorder %s71, %s74
      %p83 = scmp.eq.s32.totalorder %s17, 17
      %p84 = por %p82, %p83
      %p85 = scmp.ne.s32.totalorder %s74, %s75
      %p86 = scmp.eq.s32.totalorder %s17, 0
      %p87 = por %p85, %p86
      %p88 = scmp.ne.s32.totalorder %s74, %s75
      %p89 = scmp.eq.s32.totalorder %s18, 17
      %p90 = por %p88, %p89
      %p92 = scmp.ne.s32.totalorder %s75, %s91
      %p93 = scmp.eq.s32.totalorder %s18, 0
      %p94 = por %p92, %p93
      %s95 = ssub.s32 %s20, %s34
      %p96 = scmp.eq.s32.totalorder %s95, 0
      %s98 = sadd.s32 %s97, 1
      %s99 = scalar_select %p96, %s97, %s98
      %p102 = pneg %p96
      %p103 = scmp.eq.s32.totalorder %s12, 17
      %p104 = por %p102, %p103
      %p105 = scmp.ne.s32.totalorder %s97, %s100
      %p106 = scmp.eq.s32.totalorder %s12, 0
      %p107 = por %p105, %p106
      %p108 = scmp.ne.s32.totalorder %s97, %s100
      %p109 = scmp.eq.s32.totalorder %s17, 17
      %p110 = por %p108, %p109
      %p111 = scmp.ne.s32.totalorder %s100, %s101
      %p112 = scmp.eq.s32.totalorder %s17, 0
      %p113 = por %p111, %p112
      %p114 = scmp.ne.s32.totalorder %s100, %s101
      %p115 = scmp.eq.s32.totalorder %s18, 17
      %p116 = por %p114, %p115
      %p118 = scmp.ne.s32.totalorder %s101, %s117
      %p119 = scmp.eq.s32.totalorder %s18, 0
      %p120 = por %p118, %p119
      %s121 = ssub.s32 %s19, %s38
      %s122 = ssub.s32 %s20, %s34
      %s123 = sor.u32 %s121, %s122
      %p124 = scmp.eq.s32.totalorder %s123, 0
      %s126 = sadd.s32 %s125, 1
      %s127 = scalar_select %p124, %s125, %s126
      %p130 = pneg %p124
      %p131 = scmp.eq.s32.totalorder %s12, 17
      %p132 = por %p130, %p131
      %p133 = scmp.ne.s32.totalorder %s125, %s128
      %p134 = scmp.eq.s32.totalorder %s12, 0
      %p135 = por %p133, %p134
      %p136 = scmp.ne.s32.totalorder %s125, %s128
      %p137 = scmp.eq.s32.totalorder %s17, 17
      %p138 = por %p136, %p137
      %p139 = scmp.ne.s32.totalorder %s128, %s129
      %p140 = scmp.eq.s32.totalorder %s17, 0
      %p141 = por %p139, %p140
      %p142 = scmp.ne.s32.totalorder %s128, %s129
      %p143 = scmp.eq.s32.totalorder %s18, 17
      %p144 = por %p142, %p143
      %p146 = scmp.ne.s32.totalorder %s129, %s145
      %p147 = scmp.eq.s32.totalorder %s18, 0
      %p148 = por %p146, %p147
      %p149 = scmp.le.s32.totalorder 1, %s12
      %p150 = scmp.lt.s32.totalorder %s12, 19
      %p151 = pnand %p149, %p150
      %p152 = pneg %p151
      // Predicated region
      $region9: #{_conv2d_impl.1} parent=5 // pred_check
        _
      $region10: #{_conv2d_impl.1} parent=5 // pred_check_branch
        %154 = sbr.rel (%p151) target = $region12
      $region11: #{_conv2d_impl.1} parent=5 // pred_region
        %s155 = ssub.s32 %s12, 1
        // Predicated region
        $region13: #{_conv2d_impl.1} parent=11 // pred_check
          %p156 = pneg %p87
        $region14: #{_conv2d_impl.1} parent=11 // pred_check_branch
          %158 = sbr.rel (%p156) target = $region16
        $region15: #{_conv2d_impl.1} parent=11 // pred_region
          %s159 = smul.u32 32, %s24
          %p160 = scmp.lt.s32.totalorder %s159, 31
          %s161 = scalar_select %p160, %s159, 31
          %p162 = scmp.lt.s32.totalorder %s23, 0
          %s163 = scalar_select %p162, %s23, 0
          %s164 = sadd.s32 %s163, %s161
          %s165 = smul.addr %s164, 4
          %s166 = scalar_lea.vmem %s1, %s165
          %s167 = smul.u32 32, %s24
        $region16: #{_conv2d_impl.1} parent=11 // pred_fallthru
          _
        // Predicated region
        $region17: #{_conv2d_impl.1} parent=11 // pred_check
          %p168 = pneg %p113
        $region18: #{_conv2d_impl.1} parent=11 // pred_check_branch
          %170 = sbr.rel (%p168) target = $region20
        $region19: #{_conv2d_impl.1} parent=11 // pred_region
          %p171 = scmp.lt.s32.totalorder %s23, 0
          %s172 = scalar_select %p171, %s23, 0
          %s173 = scalar_lea.vmem %s2, %s172
        $region20: #{_conv2d_impl.1} parent=11 // pred_fallthru
          _
      $region12: #{_conv2d_impl.1} parent=5 // pred_fallthru
        _
      %p174 = scmp.lt.s32.totalorder %s12, 18
      // Predicated region
      $region21: #{_conv2d_impl.1} parent=5 // pred_check
        %p175 = pneg %p174
      $region22: #{_conv2d_impl.1} parent=5 // pred_check_branch
        %177 = sbr.rel (%p175) target = $region24
      $region23: #{_conv2d_impl.1} parent=5 // pred_region
        // Predicated region
        $region25: #{_conv2d_impl.1} parent=23 // pred_check
          %p178 = pneg %p53
        $region26: #{_conv2d_impl.1} parent=23 // pred_check_branch
          %180 = sbr.rel (%p178) target = $region28
        $region27: #{_conv2d_impl.1} parent=23 // pred_region
          %s181 = sand.u32 %s43, 1
          %s182 = scalar_lea.sflag [#allocation4], %s181
          %s183 = sand.u32 %s43, 1
          %s184 = smul.addr %s183, 512
          %s185 = scalar_lea.vmem [#allocation3], %s184
          %s186 = smul.u32 64, %s19
          %s187 = smul.u32 2, %s21
          %189 = vsyncadd %s182, 0
          %s190 = smul.addr %s186, 2
          %s191 = sadd.s32 %s187, %s190
          %s192 = smul.addr %s191, 4
          %s193 = scalar_lea.hbm %s0, %s192
          %s194 = sshll.u32 %s193, 4
          %s195 = int_to_ptr.hbm [resolvable:$true] %s194
          %s196 = sshll.u32 %s185, 4
          %s197 = int_to_ptr.vmem [resolvable:$true] %s196
          %202 = dma.hbm_to_vmem [thread:$0]  %s195, 8192, %s197, %s182, 128, 128, 8
        $region28: #{_conv2d_impl.1} parent=23 // pred_fallthru
          _
      $region24: #{_conv2d_impl.1} parent=5 // pred_fallthru
        _
      %p203 = scmp.le.s32.totalorder 1, %s12
      %p204 = scmp.lt.s32.totalorder %s12, 19
      %p205 = pnand %p203, %p204
      %p206 = pneg %p205
      // Predicated region
      $region29: #{_conv2d_impl.1} parent=5 // pred_check
        _
      $region30: #{_conv2d_impl.1} parent=5 // pred_check_branch
        %208 = sbr.rel (%p205) target = $region32
      $region31: #{_conv2d_impl.1} parent=5 // pred_region
        %s209 = ssub.s32 %s12, 1
        %s210 = sand.u32 %s46, 1
        %s211 = scalar_lea.sflag [#allocation4], %s210
        %s212 = sand.u32 %s46, 1
        %s213 = smul.addr %s212, 512
        %s214 = scalar_lea.vmem [#allocation3], %s213
        // Predicated region
        $region33: #{_conv2d_impl.1} parent=31 // pred_check
          %p215 = pneg %p59
        $region34: #{_conv2d_impl.1} parent=31 // pred_check_branch
          %217 = sbr.rel (%p215) target = $region36
        $region35: #{_conv2d_impl.1} parent=31 // pred_region
          %219 = dma.done %s211, 8192
        $region36: #{_conv2d_impl.1} parent=31 // pred_fallthru
          _
        %s220 = sand.u32 %s46, 1
        %s221 = scalar_lea.sflag [#allocation4], %s220
        %s222 = sand.u32 %s46, 1
        %s223 = smul.addr %s222, 512
        %s224 = scalar_lea.vmem [#allocation3], %s223
        %p225 = pneg %p59
        %p226 = pneg %p56
        %s227 = smul.u32 32, %s24
        %p228 = scmp.lt.s32.totalorder %s227, 31
        %s229 = scalar_select %p228, %s227, 31
        %p230 = scmp.lt.s32.totalorder %s23, 0
        %s231 = scalar_select %p230, %s23, 0
        %s232 = sadd.s32 %s231, %s229
        %s233 = smul.addr %s232, 4
        %s234 = scalar_lea.vmem %s1, %s233
        %p235 = pneg %p87
        %p236 = pneg %p84
        %p237 = scmp.lt.s32.totalorder %s23, 0
        %s238 = scalar_select %p237, %s23, 0
        %s239 = scalar_lea.vmem %s2, %s238
        %p240 = pneg %p113
        %p241 = pneg %p110
        %p242 = pneg %p141
        %p243 = pneg %p138
        %s244 = smul.u32 64, %s22
        %p245 = scmp.lt.s32.totalorder %s244, 1151
        %s246 = scalar_select %p245, %s244, 1151
        %p247 = scmp.lt.s32.totalorder %s23, 0
        %s248 = scalar_select %p247, %s23, 0
        %s249 = sadd.s32 %s248, %s246
        %s250 = smul.addr %s249, 4
        %s251 = scalar_lea.vmem %s3, %s250
        %s252 = smul.u32 64, %s22
        %s253 = smul.u32 2, %s24
        %s254 = smul.u32 32, %s24
        %p255 = scmp.lt.s32.totalorder %s254, 31
        %s256 = scalar_select %p255, %s254, 31
        %p257 = scmp.lt.s32.totalorder %s23, 0
        %s258 = scalar_select %p257, %s23, 0
        %s259 = sadd.s32 %s258, %s256
        %s260 = smul.addr %s259, 4
        %s261 = scalar_lea.vmem %s1, %s260
        %s262 = smul.u32 32, %s24
        %p263 = scmp.lt.s32.totalorder %s23, 0
        %s264 = scalar_select %p263, %s23, 0
        %s265 = scalar_lea.vmem %s2, %s264
        %s266 = smul.u32 64, %s22
        %p267 = scmp.lt.s32.totalorder %s266, 1151
        %s268 = scalar_select %p267, %s266, 1151
        %p269 = scmp.lt.s32.totalorder %s23, 0
        %s270 = scalar_select %p269, %s23, 0
        %s271 = sadd.s32 %s270, %s268
        %s272 = smul.addr %s271, 4
        %s273 = scalar_lea.vmem %s3, %s272
        %s274 = smul.u32 64, %s22
        %p275 = scmp.eq.s32.totalorder %s24, 0
        // Predicated region
        $region37: #{_conv2d_impl.1} parent=31 // pred_check
          %p276 = pneg %p275
        $region38: #{_conv2d_impl.1} parent=31 // pred_check_branch
          %278 = sbr.rel (%p276) target = $region40
        $region39: #{_conv2d_impl.1} parent=31 // pred_region
          %vm279 = vcmask 523264
          %280 = vst.msk [vmem:[#allocation2] sm:$0xff] %vm279, 0.0
          %281 = vst.msk [vmem:[#allocation2 + $0x8] sm:$0xff] %vm279, 0.0
          %282 = vst.msk [vmem:[#allocation2 + $0x10] sm:$0xff] %vm279, 0.0
          %283 = vst.msk [vmem:[#allocation2 + $0x18] sm:$0xff] %vm279, 0.0
          %284 = vst.msk [vmem:[#allocation2 + $0x20] sm:$0xff] %vm279, 0.0
          %285 = vst.msk [vmem:[#allocation2 + $0x28] sm:$0xff] %vm279, 0.0
          %286 = vst.msk [vmem:[#allocation2 + $0x30] sm:$0xff] %vm279, 0.0
          %287 = vst.msk [vmem:[#allocation2 + $0x38] sm:$0xff] %vm279, 0.0
          %288 = vst.msk [vmem:[#allocation2 + $0x40] sm:$0xff] %vm279, 0.0
          %289 = vst.msk [vmem:[#allocation2 + $0x48] sm:$0xff] %vm279, 0.0
          %290 = vst.msk [vmem:[#allocation2 + $0x50] sm:$0xff] %vm279, 0.0
          %291 = vst.msk [vmem:[#allocation2 + $0x58] sm:$0xff] %vm279, 0.0
          %292 = vst.msk [vmem:[#allocation2 + $0x60] sm:$0xff] %vm279, 0.0
          %293 = vst.msk [vmem:[#allocation2 + $0x68] sm:$0xff] %vm279, 0.0
          %294 = vst.msk [vmem:[#allocation2 + $0x70] sm:$0xff] %vm279, 0.0
          %295 = vst.msk [vmem:[#allocation2 + $0x78] sm:$0xff] %vm279, 0.0
          %296 = vst.msk [vmem:[#allocation2 + $0x80] sm:$0xff] %vm279, 0.0
          %297 = vst.msk [vmem:[#allocation2 + $0x88] sm:$0xff] %vm279, 0.0
          %298 = vst.msk [vmem:[#allocation2 + $0x90] sm:$0xff] %vm279, 0.0
          %299 = vst.msk [vmem:[#allocation2 + $0x98] sm:$0xff] %vm279, 0.0
          %300 = vst.msk [vmem:[#allocation2 + $0xa0] sm:$0xff] %vm279, 0.0
          %301 = vst.msk [vmem:[#allocation2 + $0xa8] sm:$0xff] %vm279, 0.0
          %302 = vst.msk [vmem:[#allocation2 + $0xb0] sm:$0xff] %vm279, 0.0
          %303 = vst.msk [vmem:[#allocation2 + $0xb8] sm:$0xff] %vm279, 0.0
          %304 = vst.msk [vmem:[#allocation2 + $0xc0] sm:$0xff] %vm279, 0.0
          %305 = vst.msk [vmem:[#allocation2 + $0xc8] sm:$0xff] %vm279, 0.0
          %306 = vst.msk [vmem:[#allocation2 + $0xd0] sm:$0xff] %vm279, 0.0
          %307 = vst.msk [vmem:[#allocation2 + $0xd8] sm:$0xff] %vm279, 0.0
          %308 = vst.msk [vmem:[#allocation2 + $0xe0] sm:$0xff] %vm279, 0.0
          %309 = vst.msk [vmem:[#allocation2 + $0xe8] sm:$0xff] %vm279, 0.0
          %310 = vst.msk [vmem:[#allocation2 + $0xf0] sm:$0xff] %vm279, 0.0
          %311 = vst.msk [vmem:[#allocation2 + $0xf8] sm:$0xff] %vm279, 0.0
          %312 = vst.msk [vmem:[#allocation2 + $0x100] sm:$0xff] %vm279, 0.0
          %313 = vst.msk [vmem:[#allocation2 + $0x108] sm:$0xff] %vm279, 0.0
          %314 = vst.msk [vmem:[#allocation2 + $0x110] sm:$0xff] %vm279, 0.0
          %315 = vst.msk [vmem:[#allocation2 + $0x118] sm:$0xff] %vm279, 0.0
          %316 = vst.msk [vmem:[#allocation2 + $0x120] sm:$0xff] %vm279, 0.0
          %317 = vst.msk [vmem:[#allocation2 + $0x128] sm:$0xff] %vm279, 0.0
          %318 = vst.msk [vmem:[#allocation2 + $0x130] sm:$0xff] %vm279, 0.0
          %319 = vst.msk [vmem:[#allocation2 + $0x138] sm:$0xff] %vm279, 0.0
          %320 = vst.msk [vmem:[#allocation2 + $0x140] sm:$0xff] %vm279, 0.0
          %321 = vst.msk [vmem:[#allocation2 + $0x148] sm:$0xff] %vm279, 0.0
          %322 = vst.msk [vmem:[#allocation2 + $0x150] sm:$0xff] %vm279, 0.0
          %323 = vst.msk [vmem:[#allocation2 + $0x158] sm:$0xff] %vm279, 0.0
          %324 = vst.msk [vmem:[#allocation2 + $0x160] sm:$0xff] %vm279, 0.0
          %325 = vst.msk [vmem:[#allocation2 + $0x168] sm:$0xff] %vm279, 0.0
          %326 = vst.msk [vmem:[#allocation2 + $0x170] sm:$0xff] %vm279, 0.0
          %327 = vst.msk [vmem:[#allocation2 + $0x178] sm:$0xff] %vm279, 0.0
          %328 = vst.msk [vmem:[#allocation2 + $0x180] sm:$0xff] %vm279, 0.0
          %329 = vst.msk [vmem:[#allocation2 + $0x188] sm:$0xff] %vm279, 0.0
          %330 = vst.msk [vmem:[#allocation2 + $0x190] sm:$0xff] %vm279, 0.0
          %331 = vst.msk [vmem:[#allocation2 + $0x198] sm:$0xff] %vm279, 0.0
          %332 = vst.msk [vmem:[#allocation2 + $0x1a0] sm:$0xff] %vm279, 0.0
          %333 = vst.msk [vmem:[#allocation2 + $0x1a8] sm:$0xff] %vm279, 0.0
          %334 = vst.msk [vmem:[#allocation2 + $0x1b0] sm:$0xff] %vm279, 0.0
          %335 = vst.msk [vmem:[#allocation2 + $0x1b8] sm:$0xff] %vm279, 0.0
          %336 = vst.msk [vmem:[#allocation2 + $0x1c0] sm:$0xff] %vm279, 0.0
          %337 = vst.msk [vmem:[#allocation2 + $0x1c8] sm:$0xff] %vm279, 0.0
          %338 = vst.msk [vmem:[#allocation2 + $0x1d0] sm:$0xff] %vm279, 0.0
          %339 = vst.msk [vmem:[#allocation2 + $0x1d8] sm:$0xff] %vm279, 0.0
          %340 = vst.msk [vmem:[#allocation2 + $0x1e0] sm:$0xff] %vm279, 0.0
          %341 = vst.msk [vmem:[#allocation2 + $0x1e8] sm:$0xff] %vm279, 0.0
          %342 = vst.msk [vmem:[#allocation2 + $0x1f0] sm:$0xff] %vm279, 0.0
          %343 = vst.msk [vmem:[#allocation2 + $0x1f8] sm:$0xff] %vm279, 0.0
        $region40: #{_conv2d_impl.1} parent=31 // pred_fallthru
          _
        %v344 = vld [vmem:[#allocation2] sm:$0xff]
        %v345 = vld [vmem:[#allocation2 + $0x8] sm:$0xff]
        %v346 = vld [vmem:[#allocation2 + $0x10] sm:$0xff]
        %v347 = vld [vmem:[#allocation2 + $0x18] sm:$0xff]
        %v348 = vld [vmem:[#allocation2 + $0x20] sm:$0xff]
        %v349 = vld [vmem:[#allocation2 + $0x28] sm:$0xff]
        %v350 = vld [vmem:[#allocation2 + $0x30] sm:$0xff]
        %v351 = vld [vmem:[#allocation2 + $0x38] sm:$0xff]
        %v352 = vld [vmem:[#allocation2 + $0x40] sm:$0xff]
        %v353 = vld [vmem:[#allocation2 + $0x48] sm:$0xff]
        %v354 = vld [vmem:[#allocation2 + $0x50] sm:$0xff]
        %v355 = vld [vmem:[#allocation2 + $0x58] sm:$0xff]
        %v356 = vld [vmem:[#allocation2 + $0x60] sm:$0xff]
        %v357 = vld [vmem:[#allocation2 + $0x68] sm:$0xff]
        %v358 = vld [vmem:[#allocation2 + $0x70] sm:$0xff]
        %v359 = vld [vmem:[#allocation2 + $0x78] sm:$0xff]
        %v360 = vld [vmem:[#allocation2 + $0x80] sm:$0xff]
        %v361 = vld [vmem:[#allocation2 + $0x88] sm:$0xff]
        %v362 = vld [vmem:[#allocation2 + $0x90] sm:$0xff]
        %v363 = vld [vmem:[#allocation2 + $0x98] sm:$0xff]
        %v364 = vld [vmem:[#allocation2 + $0xa0] sm:$0xff]
        %v365 = vld [vmem:[#allocation2 + $0xa8] sm:$0xff]
        %v366 = vld [vmem:[#allocation2 + $0xb0] sm:$0xff]
        %v367 = vld [vmem:[#allocation2 + $0xb8] sm:$0xff]
        %v368 = vld [vmem:[#allocation2 + $0xc0] sm:$0xff]
        %v369 = vld [vmem:[#allocation2 + $0xc8] sm:$0xff]
        %v370 = vld [vmem:[#allocation2 + $0xd0] sm:$0xff]
        %v371 = vld [vmem:[#allocation2 + $0xd8] sm:$0xff]
        %v372 = vld [vmem:[#allocation2 + $0xe0] sm:$0xff]
        %v373 = vld [vmem:[#allocation2 + $0xe8] sm:$0xff]
        %v374 = vld [vmem:[#allocation2 + $0xf0] sm:$0xff]
        %v375 = vld [vmem:[#allocation2 + $0xf8] sm:$0xff]
        %v376 = vld [vmem:[#allocation2 + $0x100] sm:$0xff]
        %v377 = vld [vmem:[#allocation2 + $0x108] sm:$0xff]
        %v378 = vld [vmem:[#allocation2 + $0x110] sm:$0xff]
        %v379 = vld [vmem:[#allocation2 + $0x118] sm:$0xff]
        %v380 = vld [vmem:[#allocation2 + $0x120] sm:$0xff]
        %v381 = vld [vmem:[#allocation2 + $0x128] sm:$0xff]
        %v382 = vld [vmem:[#allocation2 + $0x130] sm:$0xff]
        %v383 = vld [vmem:[#allocation2 + $0x138] sm:$0xff]
        %v384 = vld [vmem:[#allocation2 + $0x140] sm:$0xff]
        %v385 = vld [vmem:[#allocation2 + $0x148] sm:$0xff]
        %v386 = vld [vmem:[#allocation2 + $0x150] sm:$0xff]
        %v387 = vld [vmem:[#allocation2 + $0x158] sm:$0xff]
        %v388 = vld [vmem:[#allocation2 + $0x160] sm:$0xff]
        %v389 = vld [vmem:[#allocation2 + $0x168] sm:$0xff]
        %v390 = vld [vmem:[#allocation2 + $0x170] sm:$0xff]
        %v391 = vld [vmem:[#allocation2 + $0x178] sm:$0xff]
        %v392 = vld [vmem:[#allocation2 + $0x180] sm:$0xff]
        %v393 = vld [vmem:[#allocation2 + $0x188] sm:$0xff]
        %v394 = vld [vmem:[#allocation2 + $0x190] sm:$0xff]
        %v395 = vld [vmem:[#allocation2 + $0x198] sm:$0xff]
        %v396 = vld [vmem:[#allocation2 + $0x1a0] sm:$0xff]
        %v397 = vld [vmem:[#allocation2 + $0x1a8] sm:$0xff]
        %v398 = vld [vmem:[#allocation2 + $0x1b0] sm:$0xff]
        %v399 = vld [vmem:[#allocation2 + $0x1b8] sm:$0xff]
        %v400 = vld [vmem:[#allocation2 + $0x1c0] sm:$0xff]
        %v401 = vld [vmem:[#allocation2 + $0x1c8] sm:$0xff]
        %v402 = vld [vmem:[#allocation2 + $0x1d0] sm:$0xff]
        %v403 = vld [vmem:[#allocation2 + $0x1d8] sm:$0xff]
        %v404 = vld [vmem:[#allocation2 + $0x1e0] sm:$0xff]
        %v405 = vld [vmem:[#allocation2 + $0x1e8] sm:$0xff]
        %v406 = vld [vmem:[#allocation2 + $0x1f0] sm:$0xff]
        %v407 = vld [vmem:[#allocation2 + $0x1f8] sm:$0xff]
        %v408 = vld [vmem:[%s214] sm:$0xff]
        %v409 = vld [vmem:[%s214 + $0x8] sm:$0xff]
        %v410 = vld [vmem:[%s214 + $0x10] sm:$0xff]
        %v411 = vld [vmem:[%s214 + $0x18] sm:$0xff]
        %v412 = vld [vmem:[%s214 + $0x20] sm:$0xff]
        %v413 = vld [vmem:[%s214 + $0x28] sm:$0xff]
        %v414 = vld [vmem:[%s214 + $0x30] sm:$0xff]
        %v415 = vld [vmem:[%s214 + $0x38] sm:$0xff]
        %v416 = vld [vmem:[%s214 + $0x40] sm:$0xff]
        %v417 = vld [vmem:[%s214 + $0x48] sm:$0xff]
        %v418 = vld [vmem:[%s214 + $0x50] sm:$0xff]
        %v419 = vld [vmem:[%s214 + $0x58] sm:$0xff]
        %v420 = vld [vmem:[%s214 + $0x60] sm:$0xff]
        %v421 = vld [vmem:[%s214 + $0x68] sm:$0xff]
        %v422 = vld [vmem:[%s214 + $0x70] sm:$0xff]
        %v423 = vld [vmem:[%s214 + $0x78] sm:$0xff]
        %v424 = vld [vmem:[%s214 + $0x80] sm:$0xff]
        %v425 = vld [vmem:[%s214 + $0x88] sm:$0xff]
        %v426 = vld [vmem:[%s214 + $0x90] sm:$0xff]
        %v427 = vld [vmem:[%s214 + $0x98] sm:$0xff]
        %v428 = vld [vmem:[%s214 + $0xa0] sm:$0xff]
        %v429 = vld [vmem:[%s214 + $0xa8] sm:$0xff]
        %v430 = vld [vmem:[%s214 + $0xb0] sm:$0xff]
        %v431 = vld [vmem:[%s214 + $0xb8] sm:$0xff]
        %v432 = vld [vmem:[%s214 + $0xc0] sm:$0xff]
        %v433 = vld [vmem:[%s214 + $0xc8] sm:$0xff]
        %v434 = vld [vmem:[%s214 + $0xd0] sm:$0xff]
        %v435 = vld [vmem:[%s214 + $0xd8] sm:$0xff]
        %v436 = vld [vmem:[%s214 + $0xe0] sm:$0xff]
        %v437 = vld [vmem:[%s214 + $0xe8] sm:$0xff]
        %v438 = vld [vmem:[%s214 + $0xf0] sm:$0xff]
        %v439 = vld [vmem:[%s214 + $0xf8] sm:$0xff]
        %v440 = vld [vmem:[%s214 + $0x100] sm:$0xff]
        %v441 = vld [vmem:[%s214 + $0x108] sm:$0xff]
        %v442 = vld [vmem:[%s214 + $0x110] sm:$0xff]
        %v443 = vld [vmem:[%s214 + $0x118] sm:$0xff]
        %v444 = vld [vmem:[%s214 + $0x120] sm:$0xff]
        %v445 = vld [vmem:[%s214 + $0x128] sm:$0xff]
        %v446 = vld [vmem:[%s214 + $0x130] sm:$0xff]
        %v447 = vld [vmem:[%s214 + $0x138] sm:$0xff]
        %v448 = vld [vmem:[%s214 + $0x140] sm:$0xff]
        %v449 = vld [vmem:[%s214 + $0x148] sm:$0xff]
        %v450 = vld [vmem:[%s214 + $0x150] sm:$0xff]
        %v451 = vld [vmem:[%s214 + $0x158] sm:$0xff]
        %v452 = vld [vmem:[%s214 + $0x160] sm:$0xff]
        %v453 = vld [vmem:[%s214 + $0x168] sm:$0xff]
        %v454 = vld [vmem:[%s214 + $0x170] sm:$0xff]
        %v455 = vld [vmem:[%s214 + $0x178] sm:$0xff]
        %v456 = vld [vmem:[%s214 + $0x180] sm:$0xff]
        %v457 = vld [vmem:[%s214 + $0x188] sm:$0xff]
        %v458 = vld [vmem:[%s214 + $0x190] sm:$0xff]
        %v459 = vld [vmem:[%s214 + $0x198] sm:$0xff]
        %v460 = vld [vmem:[%s214 + $0x1a0] sm:$0xff]
        %v461 = vld [vmem:[%s214 + $0x1a8] sm:$0xff]
        %v462 = vld [vmem:[%s214 + $0x1b0] sm:$0xff]
        %v463 = vld [vmem:[%s214 + $0x1b8] sm:$0xff]
        %v464 = vld [vmem:[%s214 + $0x1c0] sm:$0xff]
        %v465 = vld [vmem:[%s214 + $0x1c8] sm:$0xff]
        %v466 = vld [vmem:[%s214 + $0x1d0] sm:$0xff]
        %v467 = vld [vmem:[%s214 + $0x1d8] sm:$0xff]
        %v468 = vld [vmem:[%s214 + $0x1e0] sm:$0xff]
        %v469 = vld [vmem:[%s214 + $0x1e8] sm:$0xff]
        %v470 = vld [vmem:[%s214 + $0x1f0] sm:$0xff]
        %v471 = vld [vmem:[%s214 + $0x1f8] sm:$0xff]
        %v472 = vld [vmem:[%s261] sm:$0xf]
        %v473 = vld [vmem:[%s261 + $0x4] sm:$0xf]
        %v474 = vld [vmem:[%s261 + $0x8] sm:$0xf]
        %v475 = vld [vmem:[%s261 + $0xc] sm:$0xf]
        %v476 = vld [vmem:[%s261 + $0x10] sm:$0xf]
        %v477 = vld [vmem:[%s261 + $0x14] sm:$0xf]
        %v478 = vld [vmem:[%s261 + $0x18] sm:$0xf]
        %v479 = vld [vmem:[%s261 + $0x1c] sm:$0xf]
        %v480 = vld [vmem:[%s261 + $0x20] sm:$0xf]
        %v481 = vld [vmem:[%s261 + $0x24] sm:$0xf]
        %v482 = vld [vmem:[%s261 + $0x28] sm:$0xf]
        %v483 = vld [vmem:[%s261 + $0x2c] sm:$0xf]
        %v484 = vld [vmem:[%s261 + $0x30] sm:$0xf]
        %v485 = vld [vmem:[%s261 + $0x34] sm:$0xf]
        %v486 = vld [vmem:[%s261 + $0x38] sm:$0xf]
        %v487 = vld [vmem:[%s261 + $0x3c] sm:$0xf]
        %v488 = vld [vmem:[%s261 + $0x40] sm:$0xf]
        %v489 = vld [vmem:[%s261 + $0x44] sm:$0xf]
        %v490 = vld [vmem:[%s261 + $0x48] sm:$0xf]
        %v491 = vld [vmem:[%s261 + $0x4c] sm:$0xf]
        %v492 = vld [vmem:[%s261 + $0x50] sm:$0xf]
        %v493 = vld [vmem:[%s261 + $0x54] sm:$0xf]
        %v494 = vld [vmem:[%s261 + $0x58] sm:$0xf]
        %v495 = vld [vmem:[%s261 + $0x5c] sm:$0xf]
        %v496 = vld [vmem:[%s261 + $0x60] sm:$0xf]
        %v497 = vld [vmem:[%s261 + $0x64] sm:$0xf]
        %v498 = vld [vmem:[%s261 + $0x68] sm:$0xf]
        %v499 = vld [vmem:[%s261 + $0x6c] sm:$0xf]
        %v500 = vld [vmem:[%s261 + $0x70] sm:$0xf]
        %v501 = vld [vmem:[%s261 + $0x74] sm:$0xf]
        %v502 = vld [vmem:[%s261 + $0x78] sm:$0xf]
        %v503 = vld [vmem:[%s261 + $0x7c] sm:$0xf]
        %v568 = vunpack.c.l.b16 %v408
        %v569 = vunpack.c.h.b16 %v408
        %v570 = vunpack.c.l.b16 %v409
        %v571 = vunpack.c.h.b16 %v409
        %v572 = vunpack.c.l.b16 %v410
        %v573 = vunpack.c.h.b16 %v410
        %v574 = vunpack.c.l.b16 %v411
        %v575 = vunpack.c.h.b16 %v411
        %v576 = vunpack.c.l.b16 %v412
        %v577 = vunpack.c.h.b16 %v412
        %v578 = vunpack.c.l.b16 %v413
        %v579 = vunpack.c.h.b16 %v413
        %v580 = vunpack.c.l.b16 %v414
        %v581 = vunpack.c.h.b16 %v414
        %v582 = vunpack.c.l.b16 %v415
        %v583 = vunpack.c.h.b16 %v415
        %v584 = vunpack.c.l.b16 %v416
        %v585 = vunpack.c.h.b16 %v416
        %v586 = vunpack.c.l.b16 %v417
        %v587 = vunpack.c.h.b16 %v417
        %v588 = vunpack.c.l.b16 %v418
        %v589 = vunpack.c.h.b16 %v418
        %v590 = vunpack.c.l.b16 %v419
        %v591 = vunpack.c.h.b16 %v419
        %v592 = vunpack.c.l.b16 %v420
        %v593 = vunpack.c.h.b16 %v420
        %v594 = vunpack.c.l.b16 %v421
        %v595 = vunpack.c.h.b16 %v421
        %v596 = vunpack.c.l.b16 %v422
        %v597 = vunpack.c.h.b16 %v422
        %v598 = vunpack.c.l.b16 %v423
        %v599 = vunpack.c.h.b16 %v423
        %v600 = vunpack.c.l.b16 %v424
        %v601 = vunpack.c.h.b16 %v424
        %v602 = vunpack.c.l.b16 %v425
        %v603 = vunpack.c.h.b16 %v425
        %v604 = vunpack.c.l.b16 %v426
        %v605 = vunpack.c.h.b16 %v426
        %v606 = vunpack.c.l.b16 %v427
        %v607 = vunpack.c.h.b16 %v427
        %v608 = vunpack.c.l.b16 %v428
        %v609 = vunpack.c.h.b16 %v428
        %v610 = vunpack.c.l.b16 %v429
        %v611 = vunpack.c.h.b16 %v429
        %v612 = vunpack.c.l.b16 %v430
        %v613 = vunpack.c.h.b16 %v430
        %v614 = vunpack.c.l.b16 %v431
        %v615 = vunpack.c.h.b16 %v431
        %v616 = vunpack.c.l.b16 %v432
        %v617 = vunpack.c.h.b16 %v432
        %v618 = vunpack.c.l.b16 %v433
        %v619 = vunpack.c.h.b16 %v433
        %v620 = vunpack.c.l.b16 %v434
        %v621 = vunpack.c.h.b16 %v434
        %v622 = vunpack.c.l.b16 %v435
        %v623 = vunpack.c.h.b16 %v435
        %v624 = vunpack.c.l.b16 %v436
        %v625 = vunpack.c.h.b16 %v436
        %v626 = vunpack.c.l.b16 %v437
        %v627 = vunpack.c.h.b16 %v437
        %v628 = vunpack.c.l.b16 %v438
        %v629 = vunpack.c.h.b16 %v438
        %v630 = vunpack.c.l.b16 %v439
        %v631 = vunpack.c.h.b16 %v439
        %v632 = vunpack.c.l.b16 %v440
        %v633 = vunpack.c.h.b16 %v440
        %v634 = vunpack.c.l.b16 %v441
        %v635 = vunpack.c.h.b16 %v441
        %v636 = vunpack.c.l.b16 %v442
        %v637 = vunpack.c.h.b16 %v442
        %v638 = vunpack.c.l.b16 %v443
        %v639 = vunpack.c.h.b16 %v443
        %v640 = vunpack.c.l.b16 %v444
        %v641 = vunpack.c.h.b16 %v444
        %v642 = vunpack.c.l.b16 %v445
        %v643 = vunpack.c.h.b16 %v445
        %v644 = vunpack.c.l.b16 %v446
        %v645 = vunpack.c.h.b16 %v446
        %v646 = vunpack.c.l.b16 %v447
        %v647 = vunpack.c.h.b16 %v447
        %v648 = vunpack.c.l.b16 %v448
        %v649 = vunpack.c.h.b16 %v448
        %v650 = vunpack.c.l.b16 %v449
        %v651 = vunpack.c.h.b16 %v449
        %v652 = vunpack.c.l.b16 %v450
        %v653 = vunpack.c.h.b16 %v450
        %v654 = vunpack.c.l.b16 %v451
        %v655 = vunpack.c.h.b16 %v451
        %v656 = vunpack.c.l.b16 %v452
        %v657 = vunpack.c.h.b16 %v452
        %v658 = vunpack.c.l.b16 %v453
        %v659 = vunpack.c.h.b16 %v453
        %v660 = vunpack.c.l.b16 %v454
        %v661 = vunpack.c.h.b16 %v454
        %v662 = vunpack.c.l.b16 %v455
        %v663 = vunpack.c.h.b16 %v455
        %v664 = vunpack.c.l.b16 %v456
        %v665 = vunpack.c.h.b16 %v456
        %v666 = vunpack.c.l.b16 %v457
        %v667 = vunpack.c.h.b16 %v457
        %v668 = vunpack.c.l.b16 %v458
        %v669 = vunpack.c.h.b16 %v458
        %v670 = vunpack.c.l.b16 %v459
        %v671 = vunpack.c.h.b16 %v459
        %v672 = vunpack.c.l.b16 %v460
        %v673 = vunpack.c.h.b16 %v460
        %v674 = vunpack.c.l.b16 %v461
        %v675 = vunpack.c.h.b16 %v461
        %v676 = vunpack.c.l.b16 %v462
        %v677 = vunpack.c.h.b16 %v462
        %v678 = vunpack.c.l.b16 %v463
        %v679 = vunpack.c.h.b16 %v463
        %v680 = vunpack.c.l.b16 %v464
        %v681 = vunpack.c.h.b16 %v464
        %v682 = vunpack.c.l.b16 %v465
        %v683 = vunpack.c.h.b16 %v465
        %v684 = vunpack.c.l.b16 %v466
        %v685 = vunpack.c.h.b16 %v466
        %v686 = vunpack.c.l.b16 %v467
        %v687 = vunpack.c.h.b16 %v467
        %v688 = vunpack.c.l.b16 %v468
        %v689 = vunpack.c.h.b16 %v468
        %v690 = vunpack.c.l.b16 %v469
        %v691 = vunpack.c.h.b16 %v469
        %v692 = vunpack.c.l.b16 %v470
        %v693 = vunpack.c.h.b16 %v470
        %v694 = vunpack.c.l.b16 %v471
        %v695 = vunpack.c.h.b16 %v471
        %v696 = vpack.c.b16 %v570, %v568
        %v697 = vpack.c.b16 %v571, %v569
        %v698 = vpack.c.b16 %v574, %v572
        %v699 = vpack.c.b16 %v575, %v573
        %v700 = vpack.c.b16 %v578, %v576
        %v701 = vpack.c.b16 %v579, %v577
        %v702 = vpack.c.b16 %v582, %v580
        %v703 = vpack.c.b16 %v583, %v581
        %v704 = vpack.c.b16 %v586, %v584
        %v705 = vpack.c.b16 %v587, %v585
        %v706 = vpack.c.b16 %v590, %v588
        %v707 = vpack.c.b16 %v591, %v589
        %v708 = vpack.c.b16 %v594, %v592
        %v709 = vpack.c.b16 %v595, %v593
        %v710 = vpack.c.b16 %v598, %v596
        %v711 = vpack.c.b16 %v599, %v597
        %v712 = vpack.c.b16 %v602, %v600
        %v713 = vpack.c.b16 %v603, %v601
        %v714 = vpack.c.b16 %v606, %v604
        %v715 = vpack.c.b16 %v607, %v605
        %v716 = vpack.c.b16 %v610, %v608
        %v717 = vpack.c.b16 %v611, %v609
        %v718 = vpack.c.b16 %v614, %v612
        %v719 = vpack.c.b16 %v615, %v613
        %v720 = vpack.c.b16 %v618, %v616
        %v721 = vpack.c.b16 %v619, %v617
        %v722 = vpack.c.b16 %v622, %v620
        %v723 = vpack.c.b16 %v623, %v621
        %v724 = vpack.c.b16 %v626, %v624
        %v725 = vpack.c.b16 %v627, %v625
        %v726 = vpack.c.b16 %v630, %v628
        %v727 = vpack.c.b16 %v631, %v629
        %v728 = vpack.c.b16 %v634, %v632
        %v729 = vpack.c.b16 %v635, %v633
        %v730 = vpack.c.b16 %v638, %v636
        %v731 = vpack.c.b16 %v639, %v637
        %v732 = vpack.c.b16 %v642, %v640
        %v733 = vpack.c.b16 %v643, %v641
        %v734 = vpack.c.b16 %v646, %v644
        %v735 = vpack.c.b16 %v647, %v645
        %v736 = vpack.c.b16 %v650, %v648
        %v737 = vpack.c.b16 %v651, %v649
        %v738 = vpack.c.b16 %v654, %v652
        %v739 = vpack.c.b16 %v655, %v653
        %v740 = vpack.c.b16 %v658, %v656
        %v741 = vpack.c.b16 %v659, %v657
        %v742 = vpack.c.b16 %v662, %v660
        %v743 = vpack.c.b16 %v663, %v661
        %v744 = vpack.c.b16 %v666, %v664
        %v745 = vpack.c.b16 %v667, %v665
        %v746 = vpack.c.b16 %v670, %v668
        %v747 = vpack.c.b16 %v671, %v669
        %v748 = vpack.c.b16 %v674, %v672
        %v749 = vpack.c.b16 %v675, %v673
        %v750 = vpack.c.b16 %v678, %v676
        %v751 = vpack.c.b16 %v679, %v677
        %v752 = vpack.c.b16 %v682, %v680
        %v753 = vpack.c.b16 %v683, %v681
        %v754 = vpack.c.b16 %v686, %v684
        %v755 = vpack.c.b16 %v687, %v685
        %v756 = vpack.c.b16 %v690, %v688
        %v757 = vpack.c.b16 %v691, %v689
        %v758 = vpack.c.b16 %v694, %v692
        %v759 = vpack.c.b16 %v695, %v693
        %v856 = vunpack.c.l.b16 %v472
        %v857 = vunpack.c.l.b16 %v473
        %v858 = vunpack.c.l.b16 %v474
        %v859 = vunpack.c.l.b16 %v475
        %v860 = vunpack.c.l.b16 %v476
        %v861 = vunpack.c.l.b16 %v477
        %v862 = vunpack.c.l.b16 %v478
        %v863 = vunpack.c.l.b16 %v479
        %v864 = vunpack.c.l.b16 %v480
        %v865 = vunpack.c.l.b16 %v481
        %v866 = vunpack.c.l.b16 %v482
        %v867 = vunpack.c.l.b16 %v483
        %v868 = vunpack.c.l.b16 %v484
        %v869 = vunpack.c.l.b16 %v485
        %v870 = vunpack.c.l.b16 %v486
        %v871 = vunpack.c.l.b16 %v487
        %v872 = vunpack.c.l.b16 %v488
        %v873 = vunpack.c.l.b16 %v489
        %v874 = vunpack.c.l.b16 %v490
        %v875 = vunpack.c.l.b16 %v491
        %v876 = vunpack.c.l.b16 %v492
        %v877 = vunpack.c.l.b16 %v493
        %v878 = vunpack.c.l.b16 %v494
        %v879 = vunpack.c.l.b16 %v495
        %v880 = vunpack.c.l.b16 %v496
        %v881 = vunpack.c.l.b16 %v497
        %v882 = vunpack.c.l.b16 %v498
        %v883 = vunpack.c.l.b16 %v499
        %v884 = vunpack.c.l.b16 %v500
        %v885 = vunpack.c.l.b16 %v501
        %v886 = vunpack.c.l.b16 %v502
        %v887 = vunpack.c.l.b16 %v503
        %v888 = vpack.c.b16 %v857, %v856
        %v889 = vpack.c.b16 %v859, %v858
        %v890 = vpack.c.b16 %v861, %v860
        %v891 = vpack.c.b16 %v863, %v862
        %v892 = vpack.c.b16 %v865, %v864
        %v893 = vpack.c.b16 %v867, %v866
        %v894 = vpack.c.b16 %v869, %v868
        %v895 = vpack.c.b16 %v871, %v870
        %v896 = vpack.c.b16 %v873, %v872
        %v897 = vpack.c.b16 %v875, %v874
        %v898 = vpack.c.b16 %v877, %v876
        %v899 = vpack.c.b16 %v879, %v878
        %v900 = vpack.c.b16 %v881, %v880
        %v901 = vpack.c.b16 %v883, %v882
        %v902 = vpack.c.b16 %v885, %v884
        %v903 = vpack.c.b16 %v887, %v886
        %920 = vmatpush.bf16.msra.mxu0 %v895
        %921 = vmatpush.bf16.msra.mxu0 %v894
        %922 = vmatpush.bf16.msra.mxu0 %v893
        %923 = vmatpush.bf16.msra.mxu0 %v892
        %924 = vmatpush.bf16.msra.mxu0 %v891
        %925 = vmatpush.bf16.msra.mxu0 %v890
        %926 = vmatpush.bf16.msra.mxu0 %v889
        %927 = vmatpush.bf16.msra.mxu0 %v888
        %928 = vmatmul.bf16.gmra.mxu0 %v696
        %v929 = vpop.f32.mrf.mxu0
        %v930 = vadd.f32 0.0, %v929
        %v931 = vpop.f32.mrf.mxu0
        %v932 = vadd.f32 0.0, %v931
        %933 = vmatmul.bf16.gmra.mxu0 %v698
        %v934 = vpop.f32.mrf.mxu0
        %v935 = vadd.f32 0.0, %v934
        %v936 = vpop.f32.mrf.mxu0
        %v937 = vadd.f32 0.0, %v936
        %938 = vmatmul.bf16.gmra.mxu0 %v700
        %v939 = vpop.f32.mrf.mxu0
        %v940 = vadd.f32 0.0, %v939
        %v941 = vpop.f32.mrf.mxu0
        %v942 = vadd.f32 0.0, %v941
        %943 = vmatmul.bf16.gmra.mxu0 %v702
        %v944 = vpop.f32.mrf.mxu0
        %v945 = vadd.f32 0.0, %v944
        %v946 = vpop.f32.mrf.mxu0
        %v947 = vadd.f32 0.0, %v946
        %948 = vmatmul.bf16.gmra.mxu0 %v704
        %v949 = vpop.f32.mrf.mxu0
        %v950 = vadd.f32 0.0, %v949
        %v951 = vpop.f32.mrf.mxu0
        %v952 = vadd.f32 0.0, %v951
        %953 = vmatmul.bf16.gmra.mxu0 %v706
        %v954 = vpop.f32.mrf.mxu0
        %v955 = vadd.f32 0.0, %v954
        %v956 = vpop.f32.mrf.mxu0
        %v957 = vadd.f32 0.0, %v956
        %958 = vmatmul.bf16.gmra.mxu0 %v708
        %v959 = vpop.f32.mrf.mxu0
        %v960 = vadd.f32 0.0, %v959
        %v961 = vpop.f32.mrf.mxu0
        %v962 = vadd.f32 0.0, %v961
        %963 = vmatmul.bf16.gmra.mxu0 %v710
        %v964 = vpop.f32.mrf.mxu0
        %v965 = vadd.f32 0.0, %v964
        %v966 = vpop.f32.mrf.mxu0
        %v967 = vadd.f32 0.0, %v966
        %968 = vmatmul.bf16.gmra.mxu0 %v712
        %v969 = vpop.f32.mrf.mxu0
        %v970 = vadd.f32 0.0, %v969
        %v971 = vpop.f32.mrf.mxu0
        %v972 = vadd.f32 0.0, %v971
        %973 = vmatmul.bf16.gmra.mxu0 %v714
        %v974 = vpop.f32.mrf.mxu0
        %v975 = vadd.f32 0.0, %v974
        %v976 = vpop.f32.mrf.mxu0
        %v977 = vadd.f32 0.0, %v976
        %978 = vmatmul.bf16.gmra.mxu0 %v716
        %v979 = vpop.f32.mrf.mxu0
        %v980 = vadd.f32 0.0, %v979
        %v981 = vpop.f32.mrf.mxu0
        %v982 = vadd.f32 0.0, %v981
        %983 = vmatmul.bf16.gmra.mxu0 %v718
        %v984 = vpop.f32.mrf.mxu0
        %v985 = vadd.f32 0.0, %v984
        %v986 = vpop.f32.mrf.mxu0
        %v987 = vadd.f32 0.0, %v986
        %988 = vmatmul.bf16.gmra.mxu0 %v720
        %v989 = vpop.f32.mrf.mxu0
        %v990 = vadd.f32 0.0, %v989
        %v991 = vpop.f32.mrf.mxu0
        %v992 = vadd.f32 0.0, %v991
        %993 = vmatmul.bf16.gmra.mxu0 %v722
        %v994 = vpop.f32.mrf.mxu0
        %v995 = vadd.f32 0.0, %v994
        %v996 = vpop.f32.mrf.mxu0
        %v997 = vadd.f32 0.0, %v996
        %998 = vmatmul.bf16.gmra.mxu0 %v724
        %v999 = vpop.f32.mrf.mxu0
        %v1000 = vadd.f32 0.0, %v999
        %v1001 = vpop.f32.mrf.mxu0
        %v1002 = vadd.f32 0.0, %v1001
        %1003 = vmatmul.bf16.gmra.mxu0 %v726
        %v1004 = vpop.f32.mrf.mxu0
        %v1005 = vadd.f32 0.0, %v1004
        %v1006 = vpop.f32.mrf.mxu0
        %v1007 = vadd.f32 0.0, %v1006
        %1008 = vmatmul.bf16.gmra.mxu0 %v728
        %v1009 = vpop.f32.mrf.mxu0
        %v1010 = vadd.f32 0.0, %v1009
        %v1011 = vpop.f32.mrf.mxu0
        %v1012 = vadd.f32 0.0, %v1011
        %1013 = vmatmul.bf16.gmra.mxu0 %v730
        %v1014 = vpop.f32.mrf.mxu0
        %v1015 = vadd.f32 0.0, %v1014
        %v1016 = vpop.f32.mrf.mxu0
        %v1017 = vadd.f32 0.0, %v1016
        %1018 = vmatmul.bf16.gmra.mxu0 %v732
        %v1019 = vpop.f32.mrf.mxu0
        %v1020 = vadd.f32 0.0, %v1019
        %v1021 = vpop.f32.mrf.mxu0
        %v1022 = vadd.f32 0.0, %v1021
        %1023 = vmatmul.bf16.gmra.mxu0 %v734
        %v1024 = vpop.f32.mrf.mxu0
        %v1025 = vadd.f32 0.0, %v1024
        %v1026 = vpop.f32.mrf.mxu0
        %v1027 = vadd.f32 0.0, %v1026
        %1028 = vmatmul.bf16.gmra.mxu0 %v736
        %v1029 = vpop.f32.mrf.mxu0
        %v1030 = vadd.f32 0.0, %v1029
        %v1031 = vpop.f32.mrf.mxu0
        %v1032 = vadd.f32 0.0, %v1031
        %1033 = vmatmul.bf16.gmra.mxu0 %v738
        %v1034 = vpop.f32.mrf.mxu0
        %v1035 = vadd.f32 0.0, %v1034
        %v1036 = vpop.f32.mrf.mxu0
        %v1037 = vadd.f32 0.0, %v1036
        %1038 = vmatmul.bf16.gmra.mxu0 %v740
        %v1039 = vpop.f32.mrf.mxu0
        %v1040 = vadd.f32 0.0, %v1039
        %v1041 = vpop.f32.mrf.mxu0
        %v1042 = vadd.f32 0.0, %v1041
        %1043 = vmatmul.bf16.gmra.mxu0 %v742
        %v1044 = vpop.f32.mrf.mxu0
        %v1045 = vadd.f32 0.0, %v1044
        %v1046 = vpop.f32.mrf.mxu0
        %v1047 = vadd.f32 0.0, %v1046
        %1048 = vmatmul.bf16.gmra.mxu0 %v744
        %v1049 = vpop.f32.mrf.mxu0
        %v1050 = vadd.f32 0.0, %v1049
        %v1051 = vpop.f32.mrf.mxu0
        %v1052 = vadd.f32 0.0, %v1051
        %1053 = vmatmul.bf16.gmra.mxu0 %v746
        %v1054 = vpop.f32.mrf.mxu0
        %v1055 = vadd.f32 0.0, %v1054
        %v1056 = vpop.f32.mrf.mxu0
        %v1057 = vadd.f32 0.0, %v1056
        %1058 = vmatmul.bf16.gmra.mxu0 %v748
        %v1059 = vpop.f32.mrf.mxu0
        %v1060 = vadd.f32 0.0, %v1059
        %v1061 = vpop.f32.mrf.mxu0
        %v1062 = vadd.f32 0.0, %v1061
        %1063 = vmatmul.bf16.gmra.mxu0 %v750
        %v1064 = vpop.f32.mrf.mxu0
        %v1065 = vadd.f32 0.0, %v1064
        %v1066 = vpop.f32.mrf.mxu0
        %v1067 = vadd.f32 0.0, %v1066
        %1068 = vmatmul.bf16.gmra.mxu0 %v752
        %v1069 = vpop.f32.mrf.mxu0
        %v1070 = vadd.f32 0.0, %v1069
        %v1071 = vpop.f32.mrf.mxu0
        %v1072 = vadd.f32 0.0, %v1071
        %1073 = vmatmul.bf16.gmra.mxu0 %v754
        %v1074 = vpop.f32.mrf.mxu0
        %v1075 = vadd.f32 0.0, %v1074
        %v1076 = vpop.f32.mrf.mxu0
        %v1077 = vadd.f32 0.0, %v1076
        %1078 = vmatmul.bf16.gmra.mxu0 %v756
        %v1079 = vpop.f32.mrf.mxu0
        %v1080 = vadd.f32 0.0, %v1079
        %v1081 = vpop.f32.mrf.mxu0
        %v1082 = vadd.f32 0.0, %v1081
        %1083 = vmatmul.bf16.gmra.mxu0 %v758
        %v1084 = vpop.f32.mrf.mxu0
        %v1085 = vadd.f32 0.0, %v1084
        %v1086 = vpop.f32.mrf.mxu0
        %v1087 = vadd.f32 0.0, %v1086
        %1088 = vdwg.mxu0
        %1089 = vmatpush.bf16.msra.mxu0 %v903
        %1090 = vmatpush.bf16.msra.mxu0 %v902
        %1091 = vmatpush.bf16.msra.mxu0 %v901
        %1092 = vmatpush.bf16.msra.mxu0 %v900
        %1093 = vmatpush.bf16.msra.mxu0 %v899
        %1094 = vmatpush.bf16.msra.mxu0 %v898
        %1095 = vmatpush.bf16.msra.mxu0 %v897
        %1096 = vmatpush.bf16.msra.mxu0 %v896
        %1097 = vmatmul.bf16.gmra.mxu0 %v697
        %v1098 = vpop.f32.mrf.mxu0
        %v1099 = vadd.f32 %v930, %v1098
        %v1100 = vpop.f32.mrf.mxu0
        %v1101 = vadd.f32 %v932, %v1100
        %1102 = vmatmul.bf16.gmra.mxu0 %v699
        %v1103 = vpop.f32.mrf.mxu0
        %v1104 = vadd.f32 %v935, %v1103
        %v1105 = vpop.f32.mrf.mxu0
        %v1106 = vadd.f32 %v937, %v1105
        %1107 = vmatmul.bf16.gmra.mxu0 %v701
        %v1108 = vpop.f32.mrf.mxu0
        %v1109 = vadd.f32 %v940, %v1108
        %v1110 = vpop.f32.mrf.mxu0
        %v1111 = vadd.f32 %v942, %v1110
        %1112 = vmatmul.bf16.gmra.mxu0 %v703
        %v1113 = vpop.f32.mrf.mxu0
        %v1114 = vadd.f32 %v945, %v1113
        %v1115 = vpop.f32.mrf.mxu0
        %v1116 = vadd.f32 %v947, %v1115
        %1117 = vmatmul.bf16.gmra.mxu0 %v705
        %v1118 = vpop.f32.mrf.mxu0
        %v1119 = vadd.f32 %v950, %v1118
        %v1120 = vpop.f32.mrf.mxu0
        %v1121 = vadd.f32 %v952, %v1120
        %1122 = vmatmul.bf16.gmra.mxu0 %v707
        %v1123 = vpop.f32.mrf.mxu0
        %v1124 = vadd.f32 %v955, %v1123
        %v1125 = vpop.f32.mrf.mxu0
        %v1126 = vadd.f32 %v957, %v1125
        %1127 = vmatmul.bf16.gmra.mxu0 %v709
        %v1128 = vpop.f32.mrf.mxu0
        %v1129 = vadd.f32 %v960, %v1128
        %v1130 = vpop.f32.mrf.mxu0
        %v1131 = vadd.f32 %v962, %v1130
        %1132 = vmatmul.bf16.gmra.mxu0 %v711
        %v1133 = vpop.f32.mrf.mxu0
        %v1134 = vadd.f32 %v965, %v1133
        %v1135 = vpop.f32.mrf.mxu0
        %v1136 = vadd.f32 %v967, %v1135
        %1137 = vmatmul.bf16.gmra.mxu0 %v713
        %v1138 = vpop.f32.mrf.mxu0
        %v1139 = vadd.f32 %v970, %v1138
        %v1140 = vpop.f32.mrf.mxu0
        %v1141 = vadd.f32 %v972, %v1140
        %1142 = vmatmul.bf16.gmra.mxu0 %v715
        %v1143 = vpop.f32.mrf.mxu0
        %v1144 = vadd.f32 %v975, %v1143
        %v1145 = vpop.f32.mrf.mxu0
        %v1146 = vadd.f32 %v977, %v1145
        %1147 = vmatmul.bf16.gmra.mxu0 %v717
        %v1148 = vpop.f32.mrf.mxu0
        %v1149 = vadd.f32 %v980, %v1148
        %v1150 = vpop.f32.mrf.mxu0
        %v1151 = vadd.f32 %v982, %v1150
        %1152 = vmatmul.bf16.gmra.mxu0 %v719
        %v1153 = vpop.f32.mrf.mxu0
        %v1154 = vadd.f32 %v985, %v1153
        %v1155 = vpop.f32.mrf.mxu0
        %v1156 = vadd.f32 %v987, %v1155
        %1157 = vmatmul.bf16.gmra.mxu0 %v721
        %v1158 = vpop.f32.mrf.mxu0
        %v1159 = vadd.f32 %v990, %v1158
        %v1160 = vpop.f32.mrf.mxu0
        %v1161 = vadd.f32 %v992, %v1160
        %1162 = vmatmul.bf16.gmra.mxu0 %v723
        %v1163 = vpop.f32.mrf.mxu0
        %v1164 = vadd.f32 %v995, %v1163
        %v1165 = vpop.f32.mrf.mxu0
        %v1166 = vadd.f32 %v997, %v1165
        %1167 = vmatmul.bf16.gmra.mxu0 %v725
        %v1168 = vpop.f32.mrf.mxu0
        %v1169 = vadd.f32 %v1000, %v1168
        %v1170 = vpop.f32.mrf.mxu0
        %v1171 = vadd.f32 %v1002, %v1170
        %1172 = vmatmul.bf16.gmra.mxu0 %v727
        %v1173 = vpop.f32.mrf.mxu0
        %v1174 = vadd.f32 %v1005, %v1173
        %v1175 = vpop.f32.mrf.mxu0
        %v1176 = vadd.f32 %v1007, %v1175
        %1177 = vmatmul.bf16.gmra.mxu0 %v729
        %v1178 = vpop.f32.mrf.mxu0
        %v1179 = vadd.f32 %v1010, %v1178
        %v1180 = vpop.f32.mrf.mxu0
        %v1181 = vadd.f32 %v1012, %v1180
        %1182 = vmatmul.bf16.gmra.mxu0 %v731
        %v1183 = vpop.f32.mrf.mxu0
        %v1184 = vadd.f32 %v1015, %v1183
        %v1185 = vpop.f32.mrf.mxu0
        %v1186 = vadd.f32 %v1017, %v1185
        %1187 = vmatmul.bf16.gmra.mxu0 %v733
        %v1188 = vpop.f32.mrf.mxu0
        %v1189 = vadd.f32 %v1020, %v1188
        %v1190 = vpop.f32.mrf.mxu0
        %v1191 = vadd.f32 %v1022, %v1190
        %1192 = vmatmul.bf16.gmra.mxu0 %v735
        %v1193 = vpop.f32.mrf.mxu0
        %v1194 = vadd.f32 %v1025, %v1193
        %v1195 = vpop.f32.mrf.mxu0
        %v1196 = vadd.f32 %v1027, %v1195
        %1197 = vmatmul.bf16.gmra.mxu0 %v737
        %v1198 = vpop.f32.mrf.mxu0
        %v1199 = vadd.f32 %v1030, %v1198
        %v1200 = vpop.f32.mrf.mxu0
        %v1201 = vadd.f32 %v1032, %v1200
        %1202 = vmatmul.bf16.gmra.mxu0 %v739
        %v1203 = vpop.f32.mrf.mxu0
        %v1204 = vadd.f32 %v1035, %v1203
        %v1205 = vpop.f32.mrf.mxu0
        %v1206 = vadd.f32 %v1037, %v1205
        %1207 = vmatmul.bf16.gmra.mxu0 %v741
        %v1208 = vpop.f32.mrf.mxu0
        %v1209 = vadd.f32 %v1040, %v1208
        %v1210 = vpop.f32.mrf.mxu0
        %v1211 = vadd.f32 %v1042, %v1210
        %1212 = vmatmul.bf16.gmra.mxu0 %v743
        %v1213 = vpop.f32.mrf.mxu0
        %v1214 = vadd.f32 %v1045, %v1213
        %v1215 = vpop.f32.mrf.mxu0
        %v1216 = vadd.f32 %v1047, %v1215
        %1217 = vmatmul.bf16.gmra.mxu0 %v745
        %v1218 = vpop.f32.mrf.mxu0
        %v1219 = vadd.f32 %v1050, %v1218
        %v1220 = vpop.f32.mrf.mxu0
        %v1221 = vadd.f32 %v1052, %v1220
        %1222 = vmatmul.bf16.gmra.mxu0 %v747
        %v1223 = vpop.f32.mrf.mxu0
        %v1224 = vadd.f32 %v1055, %v1223
        %v1225 = vpop.f32.mrf.mxu0
        %v1226 = vadd.f32 %v1057, %v1225
        %1227 = vmatmul.bf16.gmra.mxu0 %v749
        %v1228 = vpop.f32.mrf.mxu0
        %v1229 = vadd.f32 %v1060, %v1228
        %v1230 = vpop.f32.mrf.mxu0
        %v1231 = vadd.f32 %v1062, %v1230
        %1232 = vmatmul.bf16.gmra.mxu0 %v751
        %v1233 = vpop.f32.mrf.mxu0
        %v1234 = vadd.f32 %v1065, %v1233
        %v1235 = vpop.f32.mrf.mxu0
        %v1236 = vadd.f32 %v1067, %v1235
        %1237 = vmatmul.bf16.gmra.mxu0 %v753
        %v1238 = vpop.f32.mrf.mxu0
        %v1239 = vadd.f32 %v1070, %v1238
        %v1240 = vpop.f32.mrf.mxu0
        %v1241 = vadd.f32 %v1072, %v1240
        %1242 = vmatmul.bf16.gmra.mxu0 %v755
        %v1243 = vpop.f32.mrf.mxu0
        %v1244 = vadd.f32 %v1075, %v1243
        %v1245 = vpop.f32.mrf.mxu0
        %v1246 = vadd.f32 %v1077, %v1245
        %1247 = vmatmul.bf16.gmra.mxu0 %v757
        %v1248 = vpop.f32.mrf.mxu0
        %v1249 = vadd.f32 %v1080, %v1248
        %v1250 = vpop.f32.mrf.mxu0
        %v1251 = vadd.f32 %v1082, %v1250
        %1252 = vmatmul.bf16.gmra.mxu0 %v759
        %v1253 = vpop.f32.mrf.mxu0
        %v1254 = vadd.f32 %v1085, %v1253
        %v1255 = vpop.f32.mrf.mxu0
        %v1256 = vadd.f32 %v1087, %v1255
        %1257 = vdwg.mxu0
        %v1258 = vadd.f32 %v344, %v1099
        %v1259 = vadd.f32 %v345, %v1101
        %v1260 = vadd.f32 %v346, %v1104
        %v1261 = vadd.f32 %v347, %v1106
        %v1262 = vadd.f32 %v348, %v1109
        %v1263 = vadd.f32 %v349, %v1111
        %v1264 = vadd.f32 %v350, %v1114
        %v1265 = vadd.f32 %v351, %v1116
        %v1266 = vadd.f32 %v352, %v1119
        %v1267 = vadd.f32 %v353, %v1121
        %v1268 = vadd.f32 %v354, %v1124
        %v1269 = vadd.f32 %v355, %v1126
        %v1270 = vadd.f32 %v356, %v1129
        %v1271 = vadd.f32 %v357, %v1131
        %v1272 = vadd.f32 %v358, %v1134
        %v1273 = vadd.f32 %v359, %v1136
        %v1274 = vadd.f32 %v360, %v1139
        %v1275 = vadd.f32 %v361, %v1141
        %v1276 = vadd.f32 %v362, %v1144
        %v1277 = vadd.f32 %v363, %v1146
        %v1278 = vadd.f32 %v364, %v1149
        %v1279 = vadd.f32 %v365, %v1151
        %v1280 = vadd.f32 %v366, %v1154
        %v1281 = vadd.f32 %v367, %v1156
        %v1282 = vadd.f32 %v368, %v1159
        %v1283 = vadd.f32 %v369, %v1161
        %v1284 = vadd.f32 %v370, %v1164
        %v1285 = vadd.f32 %v371, %v1166
        %v1286 = vadd.f32 %v372, %v1169
        %v1287 = vadd.f32 %v373, %v1171
        %v1288 = vadd.f32 %v374, %v1174
        %v1289 = vadd.f32 %v375, %v1176
        %v1290 = vadd.f32 %v376, %v1179
        %v1291 = vadd.f32 %v377, %v1181
        %v1292 = vadd.f32 %v378, %v1184
        %v1293 = vadd.f32 %v379, %v1186
        %v1294 = vadd.f32 %v380, %v1189
        %v1295 = vadd.f32 %v381, %v1191
        %v1296 = vadd.f32 %v382, %v1194
        %v1297 = vadd.f32 %v383, %v1196
        %v1298 = vadd.f32 %v384, %v1199
        %v1299 = vadd.f32 %v385, %v1201
        %v1300 = vadd.f32 %v386, %v1204
        %v1301 = vadd.f32 %v387, %v1206
        %v1302 = vadd.f32 %v388, %v1209
        %v1303 = vadd.f32 %v389, %v1211
        %v1304 = vadd.f32 %v390, %v1214
        %v1305 = vadd.f32 %v391, %v1216
        %v1306 = vadd.f32 %v392, %v1219
        %v1307 = vadd.f32 %v393, %v1221
        %v1308 = vadd.f32 %v394, %v1224
        %v1309 = vadd.f32 %v395, %v1226
        %v1310 = vadd.f32 %v396, %v1229
        %v1311 = vadd.f32 %v397, %v1231
        %v1312 = vadd.f32 %v398, %v1234
        %v1313 = vadd.f32 %v399, %v1236
        %v1314 = vadd.f32 %v400, %v1239
        %v1315 = vadd.f32 %v401, %v1241
        %v1316 = vadd.f32 %v402, %v1244
        %v1317 = vadd.f32 %v403, %v1246
        %v1318 = vadd.f32 %v404, %v1249
        %v1319 = vadd.f32 %v405, %v1251
        %v1320 = vadd.f32 %v406, %v1254
        %v1321 = vadd.f32 %v407, %v1256
        %vm1322 = vcmask 523264
        %1323 = vst.msk [vmem:[#allocation2] sm:$0xff] %vm1322, %v1258
        %1324 = vst.msk [vmem:[#allocation2 + $0x8] sm:$0xff] %vm1322, %v1259
        %1325 = vst.msk [vmem:[#allocation2 + $0x10] sm:$0xff] %vm1322, %v1260
        %1326 = vst.msk [vmem:[#allocation2 + $0x18] sm:$0xff] %vm1322, %v1261
        %1327 = vst.msk [vmem:[#allocation2 + $0x20] sm:$0xff] %vm1322, %v1262
        %1328 = vst.msk [vmem:[#allocation2 + $0x28] sm:$0xff] %vm1322, %v1263
        %1329 = vst.msk [vmem:[#allocation2 + $0x30] sm:$0xff] %vm1322, %v1264
        %1330 = vst.msk [vmem:[#allocation2 + $0x38] sm:$0xff] %vm1322, %v1265
        %1331 = vst.msk [vmem:[#allocation2 + $0x40] sm:$0xff] %vm1322, %v1266
        %1332 = vst.msk [vmem:[#allocation2 + $0x48] sm:$0xff] %vm1322, %v1267
        %1333 = vst.msk [vmem:[#allocation2 + $0x50] sm:$0xff] %vm1322, %v1268
        %1334 = vst.msk [vmem:[#allocation2 + $0x58] sm:$0xff] %vm1322, %v1269
        %1335 = vst.msk [vmem:[#allocation2 + $0x60] sm:$0xff] %vm1322, %v1270
        %1336 = vst.msk [vmem:[#allocation2 + $0x68] sm:$0xff] %vm1322, %v1271
        %1337 = vst.msk [vmem:[#allocation2 + $0x70] sm:$0xff] %vm1322, %v1272
        %1338 = vst.msk [vmem:[#allocation2 + $0x78] sm:$0xff] %vm1322, %v1273
        %1339 = vst.msk [vmem:[#allocation2 + $0x80] sm:$0xff] %vm1322, %v1274
        %1340 = vst.msk [vmem:[#allocation2 + $0x88] sm:$0xff] %vm1322, %v1275
        %1341 = vst.msk [vmem:[#allocation2 + $0x90] sm:$0xff] %vm1322, %v1276
        %1342 = vst.msk [vmem:[#allocation2 + $0x98] sm:$0xff] %vm1322, %v1277
        %1343 = vst.msk [vmem:[#allocation2 + $0xa0] sm:$0xff] %vm1322, %v1278
        %1344 = vst.msk [vmem:[#allocation2 + $0xa8] sm:$0xff] %vm1322, %v1279
        %1345 = vst.msk [vmem:[#allocation2 + $0xb0] sm:$0xff] %vm1322, %v1280
        %1346 = vst.msk [vmem:[#allocation2 + $0xb8] sm:$0xff] %vm1322, %v1281
        %1347 = vst.msk [vmem:[#allocation2 + $0xc0] sm:$0xff] %vm1322, %v1282
        %1348 = vst.msk [vmem:[#allocation2 + $0xc8] sm:$0xff] %vm1322, %v1283
        %1349 = vst.msk [vmem:[#allocation2 + $0xd0] sm:$0xff] %vm1322, %v1284
        %1350 = vst.msk [vmem:[#allocation2 + $0xd8] sm:$0xff] %vm1322, %v1285
        %1351 = vst.msk [vmem:[#allocation2 + $0xe0] sm:$0xff] %vm1322, %v1286
        %1352 = vst.msk [vmem:[#allocation2 + $0xe8] sm:$0xff] %vm1322, %v1287
        %1353 = vst.msk [vmem:[#allocation2 + $0xf0] sm:$0xff] %vm1322, %v1288
        %1354 = vst.msk [vmem:[#allocation2 + $0xf8] sm:$0xff] %vm1322, %v1289
        %1355 = vst.msk [vmem:[#allocation2 + $0x100] sm:$0xff] %vm1322, %v1290
        %1356 = vst.msk [vmem:[#allocation2 + $0x108] sm:$0xff] %vm1322, %v1291
        %1357 = vst.msk [vmem:[#allocation2 + $0x110] sm:$0xff] %vm1322, %v1292
        %1358 = vst.msk [vmem:[#allocation2 + $0x118] sm:$0xff] %vm1322, %v1293
        %1359 = vst.msk [vmem:[#allocation2 + $0x120] sm:$0xff] %vm1322, %v1294
        %1360 = vst.msk [vmem:[#allocation2 + $0x128] sm:$0xff] %vm1322, %v1295
        %1361 = vst.msk [vmem:[#allocation2 + $0x130] sm:$0xff] %vm1322, %v1296
        %1362 = vst.msk [vmem:[#allocation2 + $0x138] sm:$0xff] %vm1322, %v1297
        %1363 = vst.msk [vmem:[#allocation2 + $0x140] sm:$0xff] %vm1322, %v1298
        %1364 = vst.msk [vmem:[#allocation2 + $0x148] sm:$0xff] %vm1322, %v1299
        %1365 = vst.msk [vmem:[#allocation2 + $0x150] sm:$0xff] %vm1322, %v1300
        %1366 = vst.msk [vmem:[#allocation2 + $0x158] sm:$0xff] %vm1322, %v1301
        %1367 = vst.msk [vmem:[#allocation2 + $0x160] sm:$0xff] %vm1322, %v1302
        %1368 = vst.msk [vmem:[#allocation2 + $0x168] sm:$0xff] %vm1322, %v1303
        %1369 = vst.msk [vmem:[#allocation2 + $0x170] sm:$0xff] %vm1322, %v1304
        %1370 = vst.msk [vmem:[#allocation2 + $0x178] sm:$0xff] %vm1322, %v1305
        %1371 = vst.msk [vmem:[#allocation2 + $0x180] sm:$0xff] %vm1322, %v1306
        %1372 = vst.msk [vmem:[#allocation2 + $0x188] sm:$0xff] %vm1322, %v1307
        %1373 = vst.msk [vmem:[#allocation2 + $0x190] sm:$0xff] %vm1322, %v1308
        %1374 = vst.msk [vmem:[#allocation2 + $0x198] sm:$0xff] %vm1322, %v1309
        %1375 = vst.msk [vmem:[#allocation2 + $0x1a0] sm:$0xff] %vm1322, %v1310
        %1376 = vst.msk [vmem:[#allocation2 + $0x1a8] sm:$0xff] %vm1322, %v1311
        %1377 = vst.msk [vmem:[#allocation2 + $0x1b0] sm:$0xff] %vm1322, %v1312
        %1378 = vst.msk [vmem:[#allocation2 + $0x1b8] sm:$0xff] %vm1322, %v1313
        %1379 = vst.msk [vmem:[#allocation2 + $0x1c0] sm:$0xff] %vm1322, %v1314
        %1380 = vst.msk [vmem:[#allocation2 + $0x1c8] sm:$0xff] %vm1322, %v1315
        %1381 = vst.msk [vmem:[#allocation2 + $0x1d0] sm:$0xff] %vm1322, %v1316
        %1382 = vst.msk [vmem:[#allocation2 + $0x1d8] sm:$0xff] %vm1322, %v1317
        %1383 = vst.msk [vmem:[#allocation2 + $0x1e0] sm:$0xff] %vm1322, %v1318
        %1384 = vst.msk [vmem:[#allocation2 + $0x1e8] sm:$0xff] %vm1322, %v1319
        %1385 = vst.msk [vmem:[#allocation2 + $0x1f0] sm:$0xff] %vm1322, %v1320
        %1386 = vst.msk [vmem:[#allocation2 + $0x1f8] sm:$0xff] %vm1322, %v1321
        // Predicated region
        $region41: #{_conv2d_impl.1} parent=31 // pred_check
          %p1387 = pneg %p275
        $region42: #{_conv2d_impl.1} parent=31 // pred_check_branch
          %1389 = sbr.rel (%p1387) target = $region44
        $region43: #{_conv2d_impl.1} parent=31 // pred_region
          %v1390 = vld [vmem:[#allocation2] sm:$0xff]
          %v1391 = vld [vmem:[#allocation2 + $0x8] sm:$0xff]
          %v1392 = vld [vmem:[#allocation2 + $0x10] sm:$0xff]
          %v1393 = vld [vmem:[#allocation2 + $0x18] sm:$0xff]
          %v1394 = vld [vmem:[#allocation2 + $0x20] sm:$0xff]
          %v1395 = vld [vmem:[#allocation2 + $0x28] sm:$0xff]
          %v1396 = vld [vmem:[#allocation2 + $0x30] sm:$0xff]
          %v1397 = vld [vmem:[#allocation2 + $0x38] sm:$0xff]
          %v1398 = vld [vmem:[#allocation2 + $0x40] sm:$0xff]
          %v1399 = vld [vmem:[#allocation2 + $0x48] sm:$0xff]
          %v1400 = vld [vmem:[#allocation2 + $0x50] sm:$0xff]
          %v1401 = vld [vmem:[#allocation2 + $0x58] sm:$0xff]
          %v1402 = vld [vmem:[#allocation2 + $0x60] sm:$0xff]
          %v1403 = vld [vmem:[#allocation2 + $0x68] sm:$0xff]
          %v1404 = vld [vmem:[#allocation2 + $0x70] sm:$0xff]
          %v1405 = vld [vmem:[#allocation2 + $0x78] sm:$0xff]
          %v1406 = vld [vmem:[#allocation2 + $0x80] sm:$0xff]
          %v1407 = vld [vmem:[#allocation2 + $0x88] sm:$0xff]
          %v1408 = vld [vmem:[#allocation2 + $0x90] sm:$0xff]
          %v1409 = vld [vmem:[#allocation2 + $0x98] sm:$0xff]
          %v1410 = vld [vmem:[#allocation2 + $0xa0] sm:$0xff]
          %v1411 = vld [vmem:[#allocation2 + $0xa8] sm:$0xff]
          %v1412 = vld [vmem:[#allocation2 + $0xb0] sm:$0xff]
          %v1413 = vld [vmem:[#allocation2 + $0xb8] sm:$0xff]
          %v1414 = vld [vmem:[#allocation2 + $0xc0] sm:$0xff]
          %v1415 = vld [vmem:[#allocation2 + $0xc8] sm:$0xff]
          %v1416 = vld [vmem:[#allocation2 + $0xd0] sm:$0xff]
          %v1417 = vld [vmem:[#allocation2 + $0xd8] sm:$0xff]
          %v1418 = vld [vmem:[#allocation2 + $0xe0] sm:$0xff]
          %v1419 = vld [vmem:[#allocation2 + $0xe8] sm:$0xff]
          %v1420 = vld [vmem:[#allocation2 + $0xf0] sm:$0xff]
          %v1421 = vld [vmem:[#allocation2 + $0xf8] sm:$0xff]
          %v1422 = vld [vmem:[#allocation2 + $0x100] sm:$0xff]
          %v1423 = vld [vmem:[#allocation2 + $0x108] sm:$0xff]
          %v1424 = vld [vmem:[#allocation2 + $0x110] sm:$0xff]
          %v1425 = vld [vmem:[#allocation2 + $0x118] sm:$0xff]
          %v1426 = vld [vmem:[#allocation2 + $0x120] sm:$0xff]
          %v1427 = vld [vmem:[#allocation2 + $0x128] sm:$0xff]
          %v1428 = vld [vmem:[#allocation2 + $0x130] sm:$0xff]
          %v1429 = vld [vmem:[#allocation2 + $0x138] sm:$0xff]
          %v1430 = vld [vmem:[#allocation2 + $0x140] sm:$0xff]
          %v1431 = vld [vmem:[#allocation2 + $0x148] sm:$0xff]
          %v1432 = vld [vmem:[#allocation2 + $0x150] sm:$0xff]
          %v1433 = vld [vmem:[#allocation2 + $0x158] sm:$0xff]
          %v1434 = vld [vmem:[#allocation2 + $0x160] sm:$0xff]
          %v1435 = vld [vmem:[#allocation2 + $0x168] sm:$0xff]
          %v1436 = vld [vmem:[#allocation2 + $0x170] sm:$0xff]
          %v1437 = vld [vmem:[#allocation2 + $0x178] sm:$0xff]
          %v1438 = vld [vmem:[#allocation2 + $0x180] sm:$0xff]
          %v1439 = vld [vmem:[#allocation2 + $0x188] sm:$0xff]
          %v1440 = vld [vmem:[#allocation2 + $0x190] sm:$0xff]
          %v1441 = vld [vmem:[#allocation2 + $0x198] sm:$0xff]
          %v1442 = vld [vmem:[#allocation2 + $0x1a0] sm:$0xff]
          %v1443 = vld [vmem:[#allocation2 + $0x1a8] sm:$0xff]
          %v1444 = vld [vmem:[#allocation2 + $0x1b0] sm:$0xff]
          %v1445 = vld [vmem:[#allocation2 + $0x1b8] sm:$0xff]
          %v1446 = vld [vmem:[#allocation2 + $0x1c0] sm:$0xff]
          %v1447 = vld [vmem:[#allocation2 + $0x1c8] sm:$0xff]
          %v1448 = vld [vmem:[#allocation2 + $0x1d0] sm:$0xff]
          %v1449 = vld [vmem:[#allocation2 + $0x1d8] sm:$0xff]
          %v1450 = vld [vmem:[#allocation2 + $0x1e0] sm:$0xff]
          %v1451 = vld [vmem:[#allocation2 + $0x1e8] sm:$0xff]
          %v1452 = vld [vmem:[#allocation2 + $0x1f0] sm:$0xff]
          %v1453 = vld [vmem:[#allocation2 + $0x1f8] sm:$0xff]
          %v1454 = vld [vmem:[%s265] sm:$0x1]
          %v1456 = vperm.slane %v1454, 0
          %v1458 = vadd.f32 %v1390, %v1456
          %v1459 = vadd.f32 %v1391, %v1456
          %v1460 = vadd.f32 %v1392, %v1456
          %v1461 = vadd.f32 %v1393, %v1456
          %v1462 = vadd.f32 %v1394, %v1456
          %v1463 = vadd.f32 %v1395, %v1456
          %v1464 = vadd.f32 %v1396, %v1456
          %v1465 = vadd.f32 %v1397, %v1456
          %v1466 = vadd.f32 %v1398, %v1456
          %v1467 = vadd.f32 %v1399, %v1456
          %v1468 = vadd.f32 %v1400, %v1456
          %v1469 = vadd.f32 %v1401, %v1456
          %v1470 = vadd.f32 %v1402, %v1456
          %v1471 = vadd.f32 %v1403, %v1456
          %v1472 = vadd.f32 %v1404, %v1456
          %v1473 = vadd.f32 %v1405, %v1456
          %v1474 = vadd.f32 %v1406, %v1456
          %v1475 = vadd.f32 %v1407, %v1456
          %v1476 = vadd.f32 %v1408, %v1456
          %v1477 = vadd.f32 %v1409, %v1456
          %v1478 = vadd.f32 %v1410, %v1456
          %v1479 = vadd.f32 %v1411, %v1456
          %v1480 = vadd.f32 %v1412, %v1456
          %v1481 = vadd.f32 %v1413, %v1456
          %v1482 = vadd.f32 %v1414, %v1456
          %v1483 = vadd.f32 %v1415, %v1456
          %v1484 = vadd.f32 %v1416, %v1456
          %v1485 = vadd.f32 %v1417, %v1456
          %v1486 = vadd.f32 %v1418, %v1456
          %v1487 = vadd.f32 %v1419, %v1456
          %v1488 = vadd.f32 %v1420, %v1456
          %v1489 = vadd.f32 %v1421, %v1456
          %v1490 = vadd.f32 %v1422, %v1456
          %v1491 = vadd.f32 %v1423, %v1456
          %v1492 = vadd.f32 %v1424, %v1456
          %v1493 = vadd.f32 %v1425, %v1456
          %v1494 = vadd.f32 %v1426, %v1456
          %v1495 = vadd.f32 %v1427, %v1456
          %v1496 = vadd.f32 %v1428, %v1456
          %v1497 = vadd.f32 %v1429, %v1456
          %v1498 = vadd.f32 %v1430, %v1456
          %v1499 = vadd.f32 %v1431, %v1456
          %v1500 = vadd.f32 %v1432, %v1456
          %v1501 = vadd.f32 %v1433, %v1456
          %v1502 = vadd.f32 %v1434, %v1456
          %v1503 = vadd.f32 %v1435, %v1456
          %v1504 = vadd.f32 %v1436, %v1456
          %v1505 = vadd.f32 %v1437, %v1456
          %v1506 = vadd.f32 %v1438, %v1456
          %v1507 = vadd.f32 %v1439, %v1456
          %v1508 = vadd.f32 %v1440, %v1456
          %v1509 = vadd.f32 %v1441, %v1456
          %v1510 = vadd.f32 %v1442, %v1456
          %v1511 = vadd.f32 %v1443, %v1456
          %v1512 = vadd.f32 %v1444, %v1456
          %v1513 = vadd.f32 %v1445, %v1456
          %v1514 = vadd.f32 %v1446, %v1456
          %v1515 = vadd.f32 %v1447, %v1456
          %v1516 = vadd.f32 %v1448, %v1456
          %v1517 = vadd.f32 %v1449, %v1456
          %v1518 = vadd.f32 %v1450, %v1456
          %v1519 = vadd.f32 %v1451, %v1456
          %v1520 = vadd.f32 %v1452, %v1456
          %v1521 = vadd.f32 %v1453, %v1456
          %v1522 = vmax.f32 %v1458, 0.0
          %v1523 = vmax.f32 %v1459, 0.0
          %v1524 = vmax.f32 %v1460, 0.0
          %v1525 = vmax.f32 %v1461, 0.0
          %v1526 = vmax.f32 %v1462, 0.0
          %v1527 = vmax.f32 %v1463, 0.0
          %v1528 = vmax.f32 %v1464, 0.0
          %v1529 = vmax.f32 %v1465, 0.0
          %v1530 = vmax.f32 %v1466, 0.0
          %v1531 = vmax.f32 %v1467, 0.0
          %v1532 = vmax.f32 %v1468, 0.0
          %v1533 = vmax.f32 %v1469, 0.0
          %v1534 = vmax.f32 %v1470, 0.0
          %v1535 = vmax.f32 %v1471, 0.0
          %v1536 = vmax.f32 %v1472, 0.0
          %v1537 = vmax.f32 %v1473, 0.0
          %v1538 = vmax.f32 %v1474, 0.0
          %v1539 = vmax.f32 %v1475, 0.0
          %v1540 = vmax.f32 %v1476, 0.0
          %v1541 = vmax.f32 %v1477, 0.0
          %v1542 = vmax.f32 %v1478, 0.0
          %v1543 = vmax.f32 %v1479, 0.0
          %v1544 = vmax.f32 %v1480, 0.0
          %v1545 = vmax.f32 %v1481, 0.0
          %v1546 = vmax.f32 %v1482, 0.0
          %v1547 = vmax.f32 %v1483, 0.0
          %v1548 = vmax.f32 %v1484, 0.0
          %v1549 = vmax.f32 %v1485, 0.0
          %v1550 = vmax.f32 %v1486, 0.0
          %v1551 = vmax.f32 %v1487, 0.0
          %v1552 = vmax.f32 %v1488, 0.0
          %v1553 = vmax.f32 %v1489, 0.0
          %v1554 = vmax.f32 %v1490, 0.0
          %v1555 = vmax.f32 %v1491, 0.0
          %v1556 = vmax.f32 %v1492, 0.0
          %v1557 = vmax.f32 %v1493, 0.0
          %v1558 = vmax.f32 %v1494, 0.0
          %v1559 = vmax.f32 %v1495, 0.0
          %v1560 = vmax.f32 %v1496, 0.0
          %v1561 = vmax.f32 %v1497, 0.0
          %v1562 = vmax.f32 %v1498, 0.0
          %v1563 = vmax.f32 %v1499, 0.0
          %v1564 = vmax.f32 %v1500, 0.0
          %v1565 = vmax.f32 %v1501, 0.0
          %v1566 = vmax.f32 %v1502, 0.0
          %v1567 = vmax.f32 %v1503, 0.0
          %v1568 = vmax.f32 %v1504, 0.0
          %v1569 = vmax.f32 %v1505, 0.0
          %v1570 = vmax.f32 %v1506, 0.0
          %v1571 = vmax.f32 %v1507, 0.0
          %v1572 = vmax.f32 %v1508, 0.0
          %v1573 = vmax.f32 %v1509, 0.0
          %v1574 = vmax.f32 %v1510, 0.0
          %v1575 = vmax.f32 %v1511, 0.0
          %v1576 = vmax.f32 %v1512, 0.0
          %v1577 = vmax.f32 %v1513, 0.0
          %v1578 = vmax.f32 %v1514, 0.0
          %v1579 = vmax.f32 %v1515, 0.0
          %v1580 = vmax.f32 %v1516, 0.0
          %v1581 = vmax.f32 %v1517, 0.0
          %v1582 = vmax.f32 %v1518, 0.0
          %v1583 = vmax.f32 %v1519, 0.0
          %v1584 = vmax.f32 %v1520, 0.0
          %v1585 = vmax.f32 %v1521, 0.0
          %v1586 = vpack.c.bf16 %v1522, %v1522
          %v1587 = vpack.c.bf16 %v1523, %v1523
          %v1588 = vpack.c.bf16 %v1524, %v1524
          %v1589 = vpack.c.bf16 %v1525, %v1525
          %v1590 = vpack.c.bf16 %v1526, %v1526
          %v1591 = vpack.c.bf16 %v1527, %v1527
          %v1592 = vpack.c.bf16 %v1528, %v1528
          %v1593 = vpack.c.bf16 %v1529, %v1529
          %v1594 = vpack.c.bf16 %v1530, %v1530
          %v1595 = vpack.c.bf16 %v1531, %v1531
          %v1596 = vpack.c.bf16 %v1532, %v1532
          %v1597 = vpack.c.bf16 %v1533, %v1533
          %v1598 = vpack.c.bf16 %v1534, %v1534
          %v1599 = vpack.c.bf16 %v1535, %v1535
          %v1600 = vpack.c.bf16 %v1536, %v1536
          %v1601 = vpack.c.bf16 %v1537, %v1537
          %v1602 = vpack.c.bf16 %v1538, %v1538
          %v1603 = vpack.c.bf16 %v1539, %v1539
          %v1604 = vpack.c.bf16 %v1540, %v1540
          %v1605 = vpack.c.bf16 %v1541, %v1541
          %v1606 = vpack.c.bf16 %v1542, %v1542
          %v1607 = vpack.c.bf16 %v1543, %v1543
          %v1608 = vpack.c.bf16 %v1544, %v1544
          %v1609 = vpack.c.bf16 %v1545, %v1545
          %v1610 = vpack.c.bf16 %v1546, %v1546
          %v1611 = vpack.c.bf16 %v1547, %v1547
          %v1612 = vpack.c.bf16 %v1548, %v1548
          %v1613 = vpack.c.bf16 %v1549, %v1549
          %v1614 = vpack.c.bf16 %v1550, %v1550
          %v1615 = vpack.c.bf16 %v1551, %v1551
          %v1616 = vpack.c.bf16 %v1552, %v1552
          %v1617 = vpack.c.bf16 %v1553, %v1553
          %v1618 = vpack.c.bf16 %v1554, %v1554
          %v1619 = vpack.c.bf16 %v1555, %v1555
          %v1620 = vpack.c.bf16 %v1556, %v1556
          %v1621 = vpack.c.bf16 %v1557, %v1557
          %v1622 = vpack.c.bf16 %v1558, %v1558
          %v1623 = vpack.c.bf16 %v1559, %v1559
          %v1624 = vpack.c.bf16 %v1560, %v1560
          %v1625 = vpack.c.bf16 %v1561, %v1561
          %v1626 = vpack.c.bf16 %v1562, %v1562
          %v1627 = vpack.c.bf16 %v1563, %v1563
          %v1628 = vpack.c.bf16 %v1564, %v1564
          %v1629 = vpack.c.bf16 %v1565, %v1565
          %v1630 = vpack.c.bf16 %v1566, %v1566
          %v1631 = vpack.c.bf16 %v1567, %v1567
          %v1632 = vpack.c.bf16 %v1568, %v1568
          %v1633 = vpack.c.bf16 %v1569, %v1569
          %v1634 = vpack.c.bf16 %v1570, %v1570
          %v1635 = vpack.c.bf16 %v1571, %v1571
          %v1636 = vpack.c.bf16 %v1572, %v1572
          %v1637 = vpack.c.bf16 %v1573, %v1573
          %v1638 = vpack.c.bf16 %v1574, %v1574
          %v1639 = vpack.c.bf16 %v1575, %v1575
          %v1640 = vpack.c.bf16 %v1576, %v1576
          %v1641 = vpack.c.bf16 %v1577, %v1577
          %v1642 = vpack.c.bf16 %v1578, %v1578
          %v1643 = vpack.c.bf16 %v1579, %v1579
          %v1644 = vpack.c.bf16 %v1580, %v1580
          %v1645 = vpack.c.bf16 %v1581, %v1581
          %v1646 = vpack.c.bf16 %v1582, %v1582
          %v1647 = vpack.c.bf16 %v1583, %v1583
          %v1648 = vpack.c.bf16 %v1584, %v1584
          %v1649 = vpack.c.bf16 %v1585, %v1585
          %vm1650 = vcmask 519168
          %1651 = vst.msk [vmem:[%s273] sm:$0xf] %vm1650, %v1586
          %1652 = vst.msk [vmem:[%s273 + $0x4] sm:$0xf] %vm1650, %v1587
          %1653 = vst.msk [vmem:[%s273 + $0x8] sm:$0xf] %vm1650, %v1588
          %1654 = vst.msk [vmem:[%s273 + $0xc] sm:$0xf] %vm1650, %v1589
          %1655 = vst.msk [vmem:[%s273 + $0x10] sm:$0xf] %vm1650, %v1590
          %1656 = vst.msk [vmem:[%s273 + $0x14] sm:$0xf] %vm1650, %v1591
          %1657 = vst.msk [vmem:[%s273 + $0x18] sm:$0xf] %vm1650, %v1592
          %1658 = vst.msk [vmem:[%s273 + $0x1c] sm:$0xf] %vm1650, %v1593
          %1659 = vst.msk [vmem:[%s273 + $0x20] sm:$0xf] %vm1650, %v1594
          %1660 = vst.msk [vmem:[%s273 + $0x24] sm:$0xf] %vm1650, %v1595
          %1661 = vst.msk [vmem:[%s273 + $0x28] sm:$0xf] %vm1650, %v1596
          %1662 = vst.msk [vmem:[%s273 + $0x2c] sm:$0xf] %vm1650, %v1597
          %1663 = vst.msk [vmem:[%s273 + $0x30] sm:$0xf] %vm1650, %v1598
          %1664 = vst.msk [vmem:[%s273 + $0x34] sm:$0xf] %vm1650, %v1599
          %1665 = vst.msk [vmem:[%s273 + $0x38] sm:$0xf] %vm1650, %v1600
          %1666 = vst.msk [vmem:[%s273 + $0x3c] sm:$0xf] %vm1650, %v1601
          %1667 = vst.msk [vmem:[%s273 + $0x40] sm:$0xf] %vm1650, %v1602
          %1668 = vst.msk [vmem:[%s273 + $0x44] sm:$0xf] %vm1650, %v1603
          %1669 = vst.msk [vmem:[%s273 + $0x48] sm:$0xf] %vm1650, %v1604
          %1670 = vst.msk [vmem:[%s273 + $0x4c] sm:$0xf] %vm1650, %v1605
          %1671 = vst.msk [vmem:[%s273 + $0x50] sm:$0xf] %vm1650, %v1606
          %1672 = vst.msk [vmem:[%s273 + $0x54] sm:$0xf] %vm1650, %v1607
          %1673 = vst.msk [vmem:[%s273 + $0x58] sm:$0xf] %vm1650, %v1608
          %1674 = vst.msk [vmem:[%s273 + $0x5c] sm:$0xf] %vm1650, %v1609
          %1675 = vst.msk [vmem:[%s273 + $0x60] sm:$0xf] %vm1650, %v1610
          %1676 = vst.msk [vmem:[%s273 + $0x64] sm:$0xf] %vm1650, %v1611
          %1677 = vst.msk [vmem:[%s273 + $0x68] sm:$0xf] %vm1650, %v1612
          %1678 = vst.msk [vmem:[%s273 + $0x6c] sm:$0xf] %vm1650, %v1613
          %1679 = vst.msk [vmem:[%s273 + $0x70] sm:$0xf] %vm1650, %v1614
          %1680 = vst.msk [vmem:[%s273 + $0x74] sm:$0xf] %vm1650, %v1615
          %1681 = vst.msk [vmem:[%s273 + $0x78] sm:$0xf] %vm1650, %v1616
          %1682 = vst.msk [vmem:[%s273 + $0x7c] sm:$0xf] %vm1650, %v1617
          %1683 = vst.msk [vmem:[%s273 + $0x80] sm:$0xf] %vm1650, %v1618
          %1684 = vst.msk [vmem:[%s273 + $0x84] sm:$0xf] %vm1650, %v1619
          %1685 = vst.msk [vmem:[%s273 + $0x88] sm:$0xf] %vm1650, %v1620
          %1686 = vst.msk [vmem:[%s273 + $0x8c] sm:$0xf] %vm1650, %v1621
          %1687 = vst.msk [vmem:[%s273 + $0x90] sm:$0xf] %vm1650, %v1622
          %1688 = vst.msk [vmem:[%s273 + $0x94] sm:$0xf] %vm1650, %v1623
          %1689 = vst.msk [vmem:[%s273 + $0x98] sm:$0xf] %vm1650, %v1624
          %1690 = vst.msk [vmem:[%s273 + $0x9c] sm:$0xf] %vm1650, %v1625
          %1691 = vst.msk [vmem:[%s273 + $0xa0] sm:$0xf] %vm1650, %v1626
          %1692 = vst.msk [vmem:[%s273 + $0xa4] sm:$0xf] %vm1650, %v1627
          %1693 = vst.msk [vmem:[%s273 + $0xa8] sm:$0xf] %vm1650, %v1628
          %1694 = vst.msk [vmem:[%s273 + $0xac] sm:$0xf] %vm1650, %v1629
          %1695 = vst.msk [vmem:[%s273 + $0xb0] sm:$0xf] %vm1650, %v1630
          %1696 = vst.msk [vmem:[%s273 + $0xb4] sm:$0xf] %vm1650, %v1631
          %1697 = vst.msk [vmem:[%s273 + $0xb8] sm:$0xf] %vm1650, %v1632
          %1698 = vst.msk [vmem:[%s273 + $0xbc] sm:$0xf] %vm1650, %v1633
          %1699 = vst.msk [vmem:[%s273 + $0xc0] sm:$0xf] %vm1650, %v1634
          %1700 = vst.msk [vmem:[%s273 + $0xc4] sm:$0xf] %vm1650, %v1635
          %1701 = vst.msk [vmem:[%s273 + $0xc8] sm:$0xf] %vm1650, %v1636
          %1702 = vst.msk [vmem:[%s273 + $0xcc] sm:$0xf] %vm1650, %v1637
          %1703 = vst.msk [vmem:[%s273 + $0xd0] sm:$0xf] %vm1650, %v1638
          %1704 = vst.msk [vmem:[%s273 + $0xd4] sm:$0xf] %vm1650, %v1639
          %1705 = vst.msk [vmem:[%s273 + $0xd8] sm:$0xf] %vm1650, %v1640
          %1706 = vst.msk [vmem:[%s273 + $0xdc] sm:$0xf] %vm1650, %v1641
          %1707 = vst.msk [vmem:[%s273 + $0xe0] sm:$0xf] %vm1650, %v1642
          %1708 = vst.msk [vmem:[%s273 + $0xe4] sm:$0xf] %vm1650, %v1643
          %1709 = vst.msk [vmem:[%s273 + $0xe8] sm:$0xf] %vm1650, %v1644
          %1710 = vst.msk [vmem:[%s273 + $0xec] sm:$0xf] %vm1650, %v1645
          %1711 = vst.msk [vmem:[%s273 + $0xf0] sm:$0xf] %vm1650, %v1646
          %1712 = vst.msk [vmem:[%s273 + $0xf4] sm:$0xf] %vm1650, %v1647
          %1713 = vst.msk [vmem:[%s273 + $0xf8] sm:$0xf] %vm1650, %v1648
          %1714 = vst.msk [vmem:[%s273 + $0xfc] sm:$0xf] %vm1650, %v1649
        $region44: #{_conv2d_impl.1} parent=31 // pred_fallthru
          _
        %s1715 = smul.u32 64, %s22
        %p1716 = scmp.lt.s32.totalorder %s1715, 1151
        %s1717 = scalar_select %p1716, %s1715, 1151
        %p1718 = scmp.lt.s32.totalorder %s23, 0
        %s1719 = scalar_select %p1718, %s23, 0
        %s1720 = sadd.s32 %s1719, %s1717
        %s1721 = smul.addr %s1720, 4
        %s1722 = scalar_lea.vmem %s3, %s1721
        // Predicated region
        $region45: #{_conv2d_impl.1} parent=31 // pred_check
          %p1723 = pneg %p138
        $region46: #{_conv2d_impl.1} parent=31 // pred_check_branch
          %1725 = sbr.rel (%p1723) target = $region48
        $region47: #{_conv2d_impl.1} parent=31 // pred_region
          %s1726 = smul.u32 64, %s22
        $region48: #{_conv2d_impl.1} parent=31 // pred_fallthru
          _
      $region32: #{_conv2d_impl.1} parent=5 // pred_fallthru
        _
      %p1727 = scmp.le.s32.totalorder 2, %s12
      // Predicated region
      $region49: #{_conv2d_impl.1} parent=5 // pred_check
        %p1728 = pneg %p1727
      $region50: #{_conv2d_impl.1} parent=5 // pred_check_branch
        %1730 = sbr.rel (%p1728) target = $region52
      $region51: #{_conv2d_impl.1} parent=5 // pred_region
        %s1731 = ssub.s32 %s12, 2
        // Predicated region
        $region53: #{_conv2d_impl.1} parent=51 // pred_check
          %p1732 = pneg %p144
        $region54: #{_conv2d_impl.1} parent=51 // pred_check_branch
          %1734 = sbr.rel (%p1732) target = $region56
        $region55: #{_conv2d_impl.1} parent=51 // pred_region
          %s1735 = smul.u32 64, %s25
          %p1736 = scmp.lt.s32.totalorder %s1735, 1151
          %s1737 = scalar_select %p1736, %s1735, 1151
          %p1738 = scmp.lt.s32.totalorder %s26, 0
          %s1739 = scalar_select %p1738, %s26, 0
          %s1740 = sadd.s32 %s1739, %s1737
          %s1741 = smul.addr %s1740, 4
          %s1742 = scalar_lea.vmem %s3, %s1741
        $region56: #{_conv2d_impl.1} parent=51 // pred_fallthru
          _
      $region52: #{_conv2d_impl.1} parent=5 // pred_fallthru
        _
    $region6: #{_conv2d_impl.1} parent=1 // loop_footer
      %s16 = sadd.s32 1, %s12
    $region7: #{_conv2d_impl.1} parent=1 // loop_footer_branch
      %11 = sbr.rel target = $region3
    $region8: #{_conv2d_impl.1} parent=1 // loop_exit
      _
    %1743 = vsyncpa [#allocation4], 1
    %s1744 = scalar_lea.sflag [#allocation4], 1
    %1745 = vsyncpa %s1744, 1

</llo_original>
